<compile_context>
chip_gen: v5e
topology: v5e:2x2
jax: 0.10.0
libtpu: 0.0.40
codegen_flags: <defaults>
</compile_context>

<pallas_src>
import jax
import jax.numpy as jnp
from jax.experimental import pallas as pl
from jax.experimental.pallas import tpu as pltpu

BERT_HIDDEN_DIM = 768


def _round_up(x, m):
    return (x + m - 1) // m * m


def _choose_tiling(M, max_tile=1024):
    """Return (n_splits, tm, M_pad).

    n_splits=2 -> both v7x TensorCores get a 'parallel' slice of the rows.
    tm is a multiple of 128 (the row axis is the *lane* axis of the pooling
    matrix block) and as large as possible (<= max_tile) to amortize the
    ~0.35us per-grid-step overhead on v5e/v6e.  M_pad >= M is a multiple of
    n_splits * tm; zero-row padding is only applied when needed.
    """
    n_splits = 2
    M_pad = _round_up(M, n_splits * 128)
    per = M_pad // n_splits
    tm = 128
    for cand in range(min(max_tile, per), 127, -128):
        if per % cand == 0:
            tm = cand
            break
    return n_splits, tm, M_pad


# ---------------------------------------------------------------------------
# Fused kernel: entity heads + attribute span pooling + attribute classifiers.
#   grid = (split c [parallel], row tile i [arbitrary])
#   ent_tile  = x_tile(bf16) @ W_ent + b_ent                  (written per step)
#   pooled   += P_tile(bf16) @ x_tile(bf16)                   (VMEM f32 scratch)
#   attr[c]   = pooled @ W_attr          (last i of each split; partial result)
# ---------------------------------------------------------------------------
def _fused_ner_kernel(x_ref, p_ref, we_ref, be_ref, wa_ref,
                      ent_ref, attr_ref, pooled_acc):
    i = pl.program_id(1)

    # in-kernel cast: the f32 activation stream is read from HBM exactly once.
    x_bf = x_ref[...].astype(jnp.bfloat16)

    # ---- all entity heads fused into one (tm, D) @ (D, Ne_pad) matmul -----
    ent = jnp.dot(x_bf, we_ref[...], preferred_element_type=jnp.float32) + be_ref[...]
    ent_ref[...] = ent.astype(ent_ref.dtype)          # bf16 writeback

    # ---- attribute span pooling: block-diagonal P tile @ x tile -----------
    @pl.when(i == 0)
    def _():
        pooled_acc[...] = jnp.zeros_like(pooled_acc)

    pooled_acc[...] += jnp.dot(p_ref[...], x_bf, preferred_element_type=jnp.float32)

    # ---- finalize this split's partial attribute logits (f32 pooled @ W) --
    @pl.when(i == pl.num_programs(1) - 1)
    def _():
        attr_ref[0] = jnp.dot(pooled_acc[...], wa_ref[...],
                              preferred_element_type=jnp.float32)


def fused_ner_heads_pallas(x_f32, p_bf16, we_bf16, be_f32, wa_f32, *, n_splits, tm):
    M_pad, D = x_f32.shape
    Np_pad = p_bf16.shape[0]
    Ne_pad = we_bf16.shape[1]
    Ca_pad = wa_f32.shape[1]
    tiles = M_pad // (n_splits * tm)          # row tiles per split
    grid = (n_splits, tiles)

    cost = pl.CostEstimate(
        flops=(2 * M_pad * D * Ne_pad            # entity heads
               + 2 * Np_pad * M_pad * D          # span pooling
               + 2 * n_splits * Np_pad * D * Ca_pad),  # classifiers
        transcendentals=0,
        bytes_accessed=(M_pad * D * 4 + Np_pad * M_pad * 2
                        + D * Ne_pad * 2 + Ne_pad * 4 + D * Ca_pad * 4
                        + M_pad * Ne_pad * 2 + n_splits * Np_pad * Ca_pad * 4),
    )

    return pl.pallas_call(
        _fused_ner_kernel,
        out_shape=(
            jax.ShapeDtypeStruct((M_pad, Ne_pad), jnp.bfloat16),
            jax.ShapeDtypeStruct((n_splits, Np_pad, Ca_pad), jnp.float32),
        ),
        grid_spec=pltpu.PrefetchScalarGridSpec(
            num_scalar_prefetch=0,
            grid=grid,
            in_specs=[
                pl.BlockSpec((tm, D), lambda c, i: (c * tiles + i, 0)),      # x
                pl.BlockSpec((Np_pad, tm), lambda c, i: (0, c * tiles + i)), # P
                pl.BlockSpec((D, Ne_pad), lambda c, i: (0, 0)),              # W_ent
                pl.BlockSpec((1, Ne_pad), lambda c, i: (0, 0)),              # b_ent
                pl.BlockSpec((D, Ca_pad), lambda c, i: (0, 0)),              # W_attr
            ],
            out_specs=(
                pl.BlockSpec((tm, Ne_pad), lambda c, i: (c * tiles + i, 0)),
                pl.BlockSpec((1, Np_pad, Ca_pad), lambda c, i: (c, 0, 0)),
            ),
            scratch_shapes=[pltpu.VMEM((Np_pad, D), jnp.float32)],
        ),
        compiler_params=pltpu.CompilerParams(
            dimension_semantics=("parallel", "arbitrary"),
            vmem_limit_bytes=32 * 1024 * 1024,
        ),
        cost_estimate=cost,
    )(x_f32, p_bf16, we_bf16, be_f32, wa_f32)


# ---------------------------------------------------------------------------
# Parameters (deterministic init mirroring torch.nn.Linear shapes)
# ---------------------------------------------------------------------------
def init_params(key, *, n_entities, attr_classes, d=BERT_HIDDEN_DIM):
    params = {"entity": [], "attribute": {}}
    bound = 1.0 / (d ** 0.5)
    keys = jax.random.split(key, 2 * n_entities + 2 * len(attr_classes))
    ki = 0
    for _ in range(n_entities):
        w = jax.random.uniform(keys[ki], (d, 3), jnp.float32, -bound, bound); ki += 1
        b = jax.random.uniform(keys[ki], (3,), jnp.float32, -bound, bound); ki += 1
        params["entity"].append((w, b))
    for name, c in attr_classes.items():
        w = jax.random.uniform(keys[ki], (d, c), jnp.float32, -bound, bound); ki += 1
        b = jax.random.uniform(keys[ki], (c,), jnp.float32, -bound, bound); ki += 1
        params["attribute"][name] = (w, b)
    return params


# ---------------------------------------------------------------------------
# Forward pass (mirrors NERTaggerModel.forward in eval mode)
# ---------------------------------------------------------------------------
def ner_tagger_forward(params, inputs):
    # ---- forward_encoding --------------------------------------------------
    # TODO(synk): the pretrained BERT encoder (AutoModel) and the optional
    # LSTM / CRF modules are external; inputs["encoder_hidden_states"] stands
    # in for encoder(...).last_hidden_state.  With sequence_overlap=None there
    # is a single split with weights all 1.0, so encoding == last_hidden_state.
    encoding = inputs["encoder_hidden_states"]          # (B, S, D) float32
    B, S, D = encoding.shape
    M = B * S

    # Dropout(p=0.1) == identity in eval mode.
    x_flat = encoding.reshape(M, D)                      # f32; cast to bf16 in-kernel

    n_splits, tm, M_pad = _choose_tiling(M)
    if M_pad != M:
        x_flat = jnp.pad(x_flat, ((0, M_pad - M), (0, 0)))

    # ---- entity heads: concatenate all E Linear(768, 3) into one slab ------
    ent_ws = [w for (w, _) in params["entity"]]
    ent_bs = [b for (_, b) in params["entity"]]
    E = len(ent_ws)
    w_cat = jnp.concatenate(ent_ws, axis=1)              # (D, 3E)
    b_cat = jnp.concatenate(ent_bs, axis=0)              # (3E,)
    ne = w_cat.shape[1]
    ne_pad = _round_up(ne, 128)
    we_pad = (jnp.zeros((D, ne_pad), jnp.float32).at[:, :ne].set(w_cat)
              .astype(jnp.bfloat16))
    be_pad = jnp.zeros((1, ne_pad), jnp.float32).at[0, :ne].set(b_cat)

    # ---- attribute heads: block-diagonal pooling matrix via direct scatter -
    attr_layout = []        # (name, None) or (name, (row_off, n, col_off, c))
    pool_rows, bidx_rows, w_blocks, b_blocks = [], [], [], []
    row_off, col_off = 0, 0
    for name, (w, b) in params["attribute"].items():
        spans = inputs["attribute_spans"][name]
        if spans["metadata"] is None:
            attr_layout.append((name, None))
            continue
        meta = spans["metadata"]                 # (n, 2) int32: [concept_idx, batch_idx]
        poolers = spans["poolers"][:, 0, :]      # (n, S)
        n = meta.shape[0]
        c = w.shape[1]
        pool_rows.append(poolers)
        bidx_rows.append(meta[:, 1])
        w_blocks.append(w)
        b_blocks.append(b)
        attr_layout.append((name, (row_off, n, col_off, c)))
        row_off += n
        col_off += c

    n_tot, c_tot = row_off, col_off
    np_pad = max(_round_up(n_tot, 8), 8)
    ca_pad = max(_round_up(c_tot, 128), 128)

    P = jnp.zeros((np_pad, M_pad), jnp.bfloat16)
    if n_tot > 0:
        poolers_all = jnp.concatenate(pool_rows, axis=0)           # (n_tot, S)
        bidx_all = jnp.concatenate(bidx_rows, axis=0)              # (n_tot,)
        col = bidx_all[:, None] * S + jnp.arange(S)[None, :]       # (n_tot, S)
        row = jnp.arange(n_tot)[:, None]
        P = P.at[row, col].set(poolers_all.astype(jnp.bfloat16))
        w_all = jnp.concatenate(w_blocks, axis=1)                  # (D, c_tot)
        wa_pad = jnp.zeros((D, ca_pad), jnp.float32).at[:, :c_tot].set(w_all)
        b_all = jnp.concatenate(b_blocks, axis=0)                  # (c_tot,)
    else:
        wa_pad = jnp.zeros((D, ca_pad), jnp.float32)
        b_all = None

    ent_flat, attr_partial = fused_ner_heads_pallas(
        x_flat, P, we_pad, be_pad, wa_pad, n_splits=n_splits, tm=tm)

    # ---- entity logits: (M_pad, ne_pad) bf16 -> (E, B, S, 3) f32 -----------
    entity_logits = (ent_flat[:M, :ne].astype(jnp.float32)
                     .reshape(B, S, E, 3).transpose(2, 0, 1, 3))

    # ---- attribute logits: sum the per-split partials, add bias, slice -----
    attribute_logits = []
    if n_tot == 0:
        attribute_logits = [None for _ in attr_layout]
    else:
        b_all_pad = jnp.zeros((ca_pad,), jnp.float32).at[:c_tot].set(b_all)
        attr_all = attr_partial.sum(axis=0) + b_all_pad[None, :]   # (np_pad, ca_pad)
        for _, layout in attr_layout:
            if layout is None:
                attribute_logits.append(None)
            else:
                r, n, c0, c = layout
                attribute_logits.append(attr_all[r:r + n, c0:c0 + c])

    return entity_logits, attribute_logits


if __name__ == "__main__":
    key = jax.random.PRNGKey(0)
    B, S, D = 2, 128, BERT_HIDDEN_DIM
    E = 4  # number of entity types
    attr_classes = {"negation": 3, "status": 5}
    n_spans = {"negation": 6, "status": 5}

    k_enc, k_par, k_sp = jax.random.split(key, 3)
    params = init_params(k_par, n_entities=E, attr_classes=attr_classes)

    # stand-in for the BERT encoder's last_hidden_state
    encoder_hidden = jax.random.normal(k_enc, (B, S, D), jnp.float32)

    attribute_spans = {}
    span_keys = jax.random.split(k_sp, len(attr_classes))
    for kk, (name, c) in zip(span_keys, attr_classes.items()):
        n = n_spans[name]
        k1, k2, k3 = jax.random.split(kk, 3)
        raw = jax.random.uniform(k1, (n, 1, S), jnp.float32)
        poolers = raw / jnp.sum(raw, axis=-1, keepdims=True)   # (n, 1, S)
        concept_idx = jax.random.randint(k2, (n,), 0, 3)
        batch_idx = jax.random.randint(k3, (n,), 0, B)
        metadata = jnp.stack([concept_idx, batch_idx], axis=1).astype(jnp.int32)
        attribute_spans[name] = {"metadata": metadata, "poolers": poolers}

    inputs = {
        "encoder_hidden_states": encoder_hidden,
        "attribute_spans": attribute_spans,
    }

    entity_logits, attribute_logits = ner_tagger_forward(params, inputs)
    entity_logits = jax.block_until_ready(entity_logits)
    attribute_logits = [a if a is None else jax.block_until_ready(a)
                        for a in attribute_logits]

    # ---- reference check (plain JAX, f32) ----
    # MXU runs bf16 with f32 accumulation, so tolerance is bf16-class.
    ref_ent = jnp.stack(
        [
            jnp.einsum("bsd,dc->bsc", encoder_hidden, w,
                       precision=jax.lax.Precision.HIGHEST) + b
            for (w, b) in params["entity"]
        ],
        axis=0,
    )
    assert entity_logits.shape == (E, B, S, 3)
    assert jnp.allclose(entity_logits, ref_ent, atol=5e-2, rtol=5e-2)

    for (name, (w, b)), logits in zip(params["attribute"].items(), attribute_logits):
        spans = attribute_spans[name]
        enc_g = encoder_hidden[spans["metadata"][:, 1]]
        rep = jnp.einsum("nks,nsd->nkd", spans["poolers"], enc_g,
                         precision=jax.lax.Precision.HIGHEST)[:, 0, :]
        ref = rep @ w + b
        assert logits.shape == ref.shape
        assert jnp.allclose(logits, ref, atol=5e-2, rtol=5e-2)

    print("KERNEL_OK")
</pallas_src>

<mosaic_0001>
module attributes {stable_mosaic.version = 11 : i64} {
  func.func @_fused_ner_kernel(%arg0: i32, %arg1: i32, %arg2: memref<128x768xf32, #tpu.memory_space<vmem>>, %arg3: memref<16x128xbf16, #tpu.memory_space<vmem>>, %arg4: memref<768x128xbf16, #tpu.memory_space<vmem>>, %arg5: memref<1x128xf32, #tpu.memory_space<vmem>>, %arg6: memref<768x128xf32, #tpu.memory_space<vmem>>, %arg7: memref<128x128xbf16, #tpu.memory_space<vmem>>, %arg8: memref<1x16x128xf32, #tpu.memory_space<vmem>>, %arg9: memref<16x768xf32, #tpu.memory_space<vmem>>) attributes {dimension_semantics = [#tpu.dimension_semantics<parallel>, #tpu.dimension_semantics<arbitrary>], iteration_bounds = array<i64: 2, 1>, scalar_prefetch = 0 : i64, scratch_operands = 1 : i64, tpu.core_type = #tpu.core_type<tc>, window_params = [{transform_indices = @transform_0, window_bounds = array<i64: 128, 768>}, {transform_indices = @transform_1, window_bounds = array<i64: 16, 128>}, {pipeline_mode = #tpu.pipeline_mode<synchronous>, transform_indices = @transform_2, window_bounds = array<i64: 768, 128>}, {pipeline_mode = #tpu.pipeline_mode<synchronous>, transform_indices = @transform_3, window_bounds = array<i64: 1, 128>}, {pipeline_mode = #tpu.pipeline_mode<synchronous>, transform_indices = @transform_4, window_bounds = array<i64: 768, 128>}, {transform_indices = @transform_5, window_bounds = array<i64: 128, 128>}, {transform_indices = @transform_6, window_bounds = array<i64: 1, 16, 128>}]} {
    %c0 = arith.constant 0 : index
    %c0_0 = arith.constant 0 : index
    %0 = vector.load %arg2[%c0, %c0_0] : memref<128x768xf32, #tpu.memory_space<vmem>>, vector<128x768xf32>
    %1 = arith.truncf %0 : vector<128x768xf32> to vector<128x768xbf16>
    %c0_1 = arith.constant 0 : index
    %c0_2 = arith.constant 0 : index
    %2 = vector.load %arg4[%c0_1, %c0_2] : memref<768x128xbf16, #tpu.memory_space<vmem>>, vector<768x128xbf16>
    %cst = arith.constant dense<0.000000e+00> : vector<128x128xf32>
    %3 = tpu.matmul %1, %2, %cst {dimension_numbers = #tpu.dot_dimension_numbers<[1], [0], [0], [1], [0, 0, 1, 1], [], []>} : vector<128x768xbf16>, vector<768x128xbf16>, vector<128x128xf32> -> vector<128x128xf32>
    %c0_3 = arith.constant 0 : index
    %c0_4 = arith.constant 0 : index
    %4 = vector.load %arg5[%c0_3, %c0_4] : memref<1x128xf32, #tpu.memory_space<vmem>>, vector<1x128xf32>
    %5 = vector.broadcast %4 : vector<1x128xf32> to vector<128x128xf32>
    %6 = arith.addf %3, %5 : vector<128x128xf32>
    %7 = arith.truncf %6 : vector<128x128xf32> to vector<128x128xbf16>
    %c0_5 = arith.constant 0 : index
    %c0_6 = arith.constant 0 : index
    %8 = vector.load %arg7[%c0_5, %c0_6] : memref<128x128xbf16, #tpu.memory_space<vmem>>, vector<128x128xbf16>
    tpu.vector_store %arg7[%c0_5, %c0_6], %7 {strides = array<i32>} : memref<128x128xbf16, #tpu.memory_space<vmem>>, vector<128x128xbf16>,
    %c0_i32 = arith.constant 0 : i32
    %9 = arith.cmpi eq, %arg1, %c0_i32 : i32
    %10 = arith.extui %9 : i1 to i32
    %c0_i32_7 = arith.constant 0 : i32
    %11 = arith.cmpi ne, %10, %c0_i32_7 : i32
    scf.if %11 {
      %cst_17 = arith.constant 0.000000e+00 : f32
      %20 = vector.broadcast %cst_17 : f32 to vector<16x768xf32>
      %c0_18 = arith.constant 0 : index
      %c0_19 = arith.constant 0 : index
      %21 = vector.load %arg9[%c0_18, %c0_19] : memref<16x768xf32, #tpu.memory_space<vmem>>, vector<16x768xf32>
      tpu.vector_store %arg9[%c0_18, %c0_19], %20 {strides = array<i32>} : memref<16x768xf32, #tpu.memory_space<vmem>>, vector<16x768xf32>,
    } else {
    }
    %c0_8 = arith.constant 0 : index
    %c0_9 = arith.constant 0 : index
    %12 = vector.load %arg9[%c0_8, %c0_9] : memref<16x768xf32, #tpu.memory_space<vmem>>, vector<16x768xf32>
    %c0_10 = arith.constant 0 : index
    %c0_11 = arith.constant 0 : index
    %13 = vector.load %arg3[%c0_10, %c0_11] : memref<16x128xbf16, #tpu.memory_space<vmem>>, vector<16x128xbf16>
    %cst_12 = arith.constant dense<0.000000e+00> : vector<16x768xf32>
    %14 = tpu.matmul %13, %1, %cst_12 {dimension_numbers = #tpu.dot_dimension_numbers<[1], [0], [0], [1], [0, 0, 1, 1], [], []>} : vector<16x128xbf16>, vector<128x768xbf16>, vector<16x768xf32> -> vector<16x768xf32>
    %15 = arith.addf %12, %14 : vector<16x768xf32>
    %c0_13 = arith.constant 0 : index
    %c0_14 = arith.constant 0 : index
    %16 = vector.load %arg9[%c0_13, %c0_14] : memref<16x768xf32, #tpu.memory_space<vmem>>, vector<16x768xf32>
    tpu.vector_store %arg9[%c0_13, %c0_14], %15 {strides = array<i32>} : memref<16x768xf32, #tpu.memory_space<vmem>>, vector<16x768xf32>,
    %c0_i32_15 = arith.constant 0 : i32
    %17 = arith.cmpi eq, %arg1, %c0_i32_15 : i32
    %18 = arith.extui %17 : i1 to i32
    %c0_i32_16 = arith.constant 0 : i32
    %19 = arith.cmpi ne, %18, %c0_i32_16 : i32
    scf.if %19 {
      %c0_17 = arith.constant 0 : index
      %c0_18 = arith.constant 0 : index
      %20 = vector.load %arg9[%c0_17, %c0_18] : memref<16x768xf32, #tpu.memory_space<vmem>>, vector<16x768xf32>
      %c0_19 = arith.constant 0 : index
      %c0_20 = arith.constant 0 : index
      %21 = vector.load %arg6[%c0_19, %c0_20] : memref<768x128xf32, #tpu.memory_space<vmem>>, vector<768x128xf32>
      %cst_21 = arith.constant dense<0.000000e+00> : vector<16x128xf32>
      %22 = tpu.matmul %20, %21, %cst_21 {dimension_numbers = #tpu.dot_dimension_numbers<[1], [0], [0], [1], [0, 0, 1, 1], [], []>} : vector<16x768xf32>, vector<768x128xf32>, vector<16x128xf32> -> vector<16x128xf32>
      %c0_22 = arith.constant 0 : index
      %c0_23 = arith.constant 0 : index
      %c0_24 = arith.constant 0 : index
      %23 = vector.load %arg8[%c0_22, %c0_23, %c0_24] : memref<1x16x128xf32, #tpu.memory_space<vmem>>, vector<1x16x128xf32>
      %24 = vector.shape_cast %23 : vector<1x16x128xf32> to vector<16x128xf32>
      %25 = vector.shape_cast %22 : vector<16x128xf32> to vector<1x16x128xf32>
      tpu.vector_store %arg8[%c0_22, %c0_23, %c0_24], %25 {strides = array<i32>} : memref<1x16x128xf32, #tpu.memory_space<vmem>>, vector<1x16x128xf32>,
    } else {
    }
    return
  }
  func.func @transform_0(%arg0: i32, %arg1: i32) -> (i32, i32) {
    %c1_i32 = arith.constant 1 : i32
    %0 = arith.muli %arg0, %c1_i32 : i32
    %1 = arith.addi %0, %arg1 : i32
    %c0_i32 = arith.constant 0 : i32
    %c0_i32_0 = arith.constant 0 : i32
    return %1, %c0_i32 : i32, i32
  }
  func.func @transform_1(%arg0: i32, %arg1: i32) -> (i32, i32) {
    %c1_i32 = arith.constant 1 : i32
    %0 = arith.muli %arg0, %c1_i32 : i32
    %1 = arith.addi %0, %arg1 : i32
    %c0_i32 = arith.constant 0 : i32
    %c0_i32_0 = arith.constant 0 : i32
    return %c0_i32, %1 : i32, i32
  }
  func.func @transform_2(%arg0: i32, %arg1: i32) -> (i32, i32) {
    %c0_i32 = arith.constant 0 : i32
    %c0_i32_0 = arith.constant 0 : i32
    %c0_i32_1 = arith.constant 0 : i32
    return %c0_i32, %c0_i32_0 : i32, i32
  }
  func.func @transform_3(%arg0: i32, %arg1: i32) -> (i32, i32) {
    %c0_i32 = arith.constant 0 : i32
    %c0_i32_0 = arith.constant 0 : i32
    %c0_i32_1 = arith.constant 0 : i32
    return %c0_i32, %c0_i32_0 : i32, i32
  }
  func.func @transform_4(%arg0: i32, %arg1: i32) -> (i32, i32) {
    %c0_i32 = arith.constant 0 : i32
    %c0_i32_0 = arith.constant 0 : i32
    %c0_i32_1 = arith.constant 0 : i32
    return %c0_i32, %c0_i32_0 : i32, i32
  }
  func.func @transform_5(%arg0: i32, %arg1: i32) -> (i32, i32) {
    %c1_i32 = arith.constant 1 : i32
    %0 = arith.muli %arg0, %c1_i32 : i32
    %1 = arith.addi %0, %arg1 : i32
    %c0_i32 = arith.constant 0 : i32
    %c0_i32_0 = arith.constant 0 : i32
    return %1, %c0_i32 : i32, i32
  }
  func.func @transform_6(%arg0: i32, %arg1: i32) -> (i32, i32, i32) {
    %c0_i32 = arith.constant 0 : i32
    %c0_i32_0 = arith.constant 0 : i32
    %c0_i32_1 = arith.constant 0 : i32
    return %arg0, %c0_i32, %c0_i32_0 : i32, i32, i32
  }
}

</mosaic_0001>

<llo_original>
// kernel: tpu_custom_call.1
$region0: #{tpu_custom_call.1}
  #allocation0 [shape = 'u32[]', space=smem, size = 0x4, offset = 0x4, fixed_abs, tag = 'smem constant byte address 0x4 - core index']
  #allocation1 [shape = 'u32[72,128]{1,0:T(1,128)}', space=vmem, size = 0x9000, scoped, tag = 'internal scratch']
  #allocation2 [shape = 'f32[16,768]{1,0:T(8,128)}', space=vmem, size = 0xc000, scoped, tag = 'scratch operand']
  %s0 = inlined_call_operand.hbm [shape: f32[256,768], index: 0, kind: input, shape index: {}]
  %s1 = inlined_call_operand.hbm [shape: bf16[16,256], index: 1, kind: input, shape index: {}]
  %s2 = inlined_call_operand.hbm [shape: bf16[768,128], index: 2, kind: input, shape index: {}]
  %s3 = inlined_call_operand.vmem [shape: f32[1,128], index: 3, kind: input, shape index: {}]
  %s4 = inlined_call_operand.hbm [shape: f32[768,128], index: 4, kind: input, shape index: {}]
  %s5 = inlined_call_operand.hbm [shape: bf16[256,128], index: 5, kind: output, shape index: {0}]
  %s6 = inlined_call_operand.hbm [shape: f32[2,16,128], index: 6, kind: output, shape index: {1}]
  %7 = xla_tuple %s5, %s6
  %s8 = sld [smem:[#allocation0]]
  $region85: #{tpu_custom_call.1} parent=0
    _
  %s10 = ssub.s32 1, %s8
  %s11 = scalar_select 0, %s10, %s8
  $region1: #{tpu_custom_call.1} parent=0
    #allocation3 [shape = 'u8[786432]{0}', space=vmem, size = 0xc0000, scoped, tag = 'input window, operand 0']
    #allocation4 [shape = 's32[2]{0}', space=sflag, size = 0x8, scoped, tag = 'scoped memory for tpu_custom_call.1']
    #allocation5 [shape = 's32[2]{0}', space=sflag, size = 0x8, scoped, tag = 'scoped memory for tpu_custom_call.1']
    #allocation6 [shape = 'u8[8192]{0}', space=vmem, size = 0x2000, scoped, tag = 'input window, operand 1']
    #allocation7 [shape = 's32[2]{0}', space=sflag, size = 0x8, scoped, tag = 'scoped memory for tpu_custom_call.1']
    #allocation8 [shape = 'u8[196608]{0}', space=vmem, size = 0x30000, scoped, tag = 'input window, operand 2, single buffered']
    #allocation9 [shape = 'u8[393216]{0}', space=vmem, size = 0x60000, scoped, tag = 'input window, operand 4, single buffered']
    #allocation10 [shape = 's32[1]{0}', space=sflag, size = 0x4, scoped, tag = 'scoped memory for tpu_custom_call.1']
    #allocation11 [shape = 'u8[65536]{0}', space=vmem, size = 0x10000, scoped, tag = 'output window, operand 0']
    #allocation12 [shape = 'u8[16384]{0}', space=vmem, size = 0x4000, scoped, tag = 'output window, operand 1']
    #allocation13 [shape = 's32[2]{0}', space=sflag, size = 0x8, scoped, tag = 'scoped memory for tpu_custom_call.1']
    %12 = vsyncpa [#allocation4], 0
    %s13 = scalar_lea.sflag [#allocation4], 1
    %14 = vsyncpa %s13, 0
    %15 = vsyncpa [#allocation7], 0
    %s16 = scalar_lea.sflag [#allocation7], 1
    %17 = vsyncpa %s16, 0
    %18 = vsyncpa [#allocation10], 0
    %19 = vsyncpa [#allocation5], 0
    %s20 = scalar_lea.sflag [#allocation5], 1
    %21 = vsyncpa %s20, 0
    %22 = vsyncpa [#allocation13], 0
    %s23 = scalar_lea.sflag [#allocation13], 1
    %24 = vsyncpa %s23, 0
    loop: start=0, step=1, limit=4
    $region2: #{tpu_custom_call.1} parent=1 // loop_pre_header
      _
    $region3: #{tpu_custom_call.1} parent=1 // loop_header
      %s26 = sphi 0, %s30
      %p27 = scmp.ge.s32.totalorder %s26, 4
      %s33 = sphi 0, %s45
      %s34 = sphi 0, %s41
      %s35 = sphi 0, %s33
      %s36 = sphi 0, %s34
      %s37 = sphi 0, %s35
      %s38 = sphi 0, %s36
      %s50 = sphi 0, %s52
      %s53 = sphi 0, %s50
      %s54 = sphi 0, %s53
      %s70 = sphi 0, %s54
      %s78 = sphi 0, %s80
      %s81 = sphi 0, %s78
      %s82 = sphi 0, %s81
      %s98 = sphi 0, %s82
      %s102 = sphi 0, %s102
      %s104 = sphi 0, %s102
      %s105 = sphi 0, %s104
      %s119 = sphi 0, %s105
      %s123 = sphi 0, %s123
      %s125 = sphi 0, %s123
      %s126 = sphi 0, %s125
      %s140 = sphi 0, %s126
      %s144 = sphi 0, %s144
      %s146 = sphi 0, %s144
      %s147 = sphi 0, %s146
      %s161 = sphi 0, %s147
      %s169 = sphi 0, %s171
      %s172 = sphi 0, %s169
      %s173 = sphi 0, %s172
      %s189 = sphi 0, %s173
      %s195 = sphi 0, %s197
      %s198 = sphi 0, %s195
      %s199 = sphi 0, %s198
      %s215 = sphi 0, %s199
    $region4: #{tpu_custom_call.1} parent=1 // loop_header_branch
      %29 = sbr.rel (%p27) target = $region8
    $region5: #{tpu_custom_call.1} parent=1 // loop_body
      %s31 = ssub.s32 %s26, 1
      %s32 = ssub.s32 %s26, 2
      %s39 = sadd.s32 1, %s34
      %p40 = scmp.ge.s32.totalorder %s39, 1
      %s41 = scalar_select %p40, 0, %s39
      %s42 = sadd.s32 1, %s33
      %s43 = scalar_select %p40, %s42, %s33
      %p44 = scmp.ge.s32.totalorder %s43, 2
      %s45 = scalar_select %p44, 0, %s43
      %s46 = sadd.s32 %s33, %s34
      %s47 = sadd.s32 %s45, %s41
      %s48 = ssub.s32 %s46, %s47
      %p49 = scmp.eq.s32.totalorder %s48, 0
      %s51 = sadd.s32 %s50, 1
      %s52 = scalar_select %p49, %s50, %s51
      %p55 = pneg %p49
      %p56 = scmp.eq.s32.totalorder %s26, 1
      %p57 = por %p55, %p56
      %p58 = scmp.ne.s32.totalorder %s50, %s53
      %p59 = scmp.eq.s32.totalorder %s26, 0
      %p60 = por %p58, %p59
      %p61 = scmp.ne.s32.totalorder %s50, %s53
      %p62 = scmp.eq.s32.totalorder %s31, 1
      %p63 = por %p61, %p62
      %p64 = scmp.ne.s32.totalorder %s53, %s54
      %p65 = scmp.eq.s32.totalorder %s31, 0
      %p66 = por %p64, %p65
      %p67 = scmp.ne.s32.totalorder %s53, %s54
      %p68 = scmp.eq.s32.totalorder %s32, 1
      %p69 = por %p67, %p68
      %p71 = scmp.ne.s32.totalorder %s54, %s70
      %p72 = scmp.eq.s32.totalorder %s32, 0
      %p73 = por %p71, %p72
      %s74 = sadd.s32 %s33, %s34
      %s75 = sadd.s32 %s45, %s41
      %s76 = ssub.s32 %s74, %s75
      %p77 = scmp.eq.s32.totalorder %s76, 0
      %s79 = sadd.s32 %s78, 1
      %s80 = scalar_select %p77, %s78, %s79
      %p83 = pneg %p77
      %p84 = scmp.eq.s32.totalorder %s26, 1
      %p85 = por %p83, %p84
      %p86 = scmp.ne.s32.totalorder %s78, %s81
      %p87 = scmp.eq.s32.totalorder %s26, 0
      %p88 = por %p86, %p87
      %p89 = scmp.ne.s32.totalorder %s78, %s81
      %p90 = scmp.eq.s32.totalorder %s31, 1
      %p91 = por %p89, %p90
      %p92 = scmp.ne.s32.totalorder %s81, %s82
      %p93 = scmp.eq.s32.totalorder %s31, 0
      %p94 = por %p92, %p93
      %p95 = scmp.ne.s32.totalorder %s81, %s82
      %p96 = scmp.eq.s32.totalorder %s32, 1
      %p97 = por %p95, %p96
      %p99 = scmp.ne.s32.totalorder %s82, %s98
      %p100 = scmp.eq.s32.totalorder %s32, 0
      %p101 = por %p99, %p100
      %s103 = sadd.s32 %s102, 1
      %p106 = scmp.eq.s32.totalorder %s26, 1
      %p107 = scmp.ne.s32.totalorder %s102, %s104
      %p108 = scmp.eq.s32.totalorder %s26, 0
      %p109 = por %p107, %p108
      %p110 = scmp.ne.s32.totalorder %s102, %s104
      %p111 = scmp.eq.s32.totalorder %s31, 1
      %p112 = por %p110, %p111
      %p113 = scmp.ne.s32.totalorder %s104, %s105
      %p114 = scmp.eq.s32.totalorder %s31, 0
      %p115 = por %p113, %p114
      %p116 = scmp.ne.s32.totalorder %s104, %s105
      %p117 = scmp.eq.s32.totalorder %s32, 1
      %p118 = por %p116, %p117
      %p120 = scmp.ne.s32.totalorder %s105, %s119
      %p121 = scmp.eq.s32.totalorder %s32, 0
      %p122 = por %p120, %p121
      %s124 = sadd.s32 %s123, 1
      %p127 = scmp.eq.s32.totalorder %s26, 1
      %p128 = scmp.ne.s32.totalorder %s123, %s125
      %p129 = scmp.eq.s32.totalorder %s26, 0
      %p130 = por %p128, %p129
      %p131 = scmp.ne.s32.totalorder %s123, %s125
      %p132 = scmp.eq.s32.totalorder %s31, 1
      %p133 = por %p131, %p132
      %p134 = scmp.ne.s32.totalorder %s125, %s126
      %p135 = scmp.eq.s32.totalorder %s31, 0
      %p136 = por %p134, %p135
      %p137 = scmp.ne.s32.totalorder %s125, %s126
      %p138 = scmp.eq.s32.totalorder %s32, 1
      %p139 = por %p137, %p138
      %p141 = scmp.ne.s32.totalorder %s126, %s140
      %p142 = scmp.eq.s32.totalorder %s32, 0
      %p143 = por %p141, %p142
      %s145 = sadd.s32 %s144, 1
      %p148 = scmp.eq.s32.totalorder %s26, 1
      %p149 = scmp.ne.s32.totalorder %s144, %s146
      %p150 = scmp.eq.s32.totalorder %s26, 0
      %p151 = por %p149, %p150
      %p152 = scmp.ne.s32.totalorder %s144, %s146
      %p153 = scmp.eq.s32.totalorder %s31, 1
      %p154 = por %p152, %p153
      %p155 = scmp.ne.s32.totalorder %s146, %s147
      %p156 = scmp.eq.s32.totalorder %s31, 0
      %p157 = por %p155, %p156
      %p158 = scmp.ne.s32.totalorder %s146, %s147
      %p159 = scmp.eq.s32.totalorder %s32, 1
      %p160 = por %p158, %p159
      %p162 = scmp.ne.s32.totalorder %s147, %s161
      %p163 = scmp.eq.s32.totalorder %s32, 0
      %p164 = por %p162, %p163
      %s165 = sadd.s32 %s33, %s34
      %s166 = sadd.s32 %s45, %s41
      %s167 = ssub.s32 %s165, %s166
      %p168 = scmp.eq.s32.totalorder %s167, 0
      %s170 = sadd.s32 %s169, 1
      %s171 = scalar_select %p168, %s169, %s170
      %p174 = pneg %p168
      %p175 = scmp.eq.s32.totalorder %s26, 1
      %p176 = por %p174, %p175
      %p177 = scmp.ne.s32.totalorder %s169, %s172
      %p178 = scmp.eq.s32.totalorder %s26, 0
      %p179 = por %p177, %p178
      %p180 = scmp.ne.s32.totalorder %s169, %s172
      %p181 = scmp.eq.s32.totalorder %s31, 1
      %p182 = por %p180, %p181
      %p183 = scmp.ne.s32.totalorder %s172, %s173
      %p184 = scmp.eq.s32.totalorder %s31, 0
      %p185 = por %p183, %p184
      %p186 = scmp.ne.s32.totalorder %s172, %s173
      %p187 = scmp.eq.s32.totalorder %s32, 1
      %p188 = por %p186, %p187
      %p190 = scmp.ne.s32.totalorder %s173, %s189
      %p191 = scmp.eq.s32.totalorder %s32, 0
      %p192 = por %p190, %p191
      %s193 = ssub.s32 %s33, %s45
      %p194 = scmp.eq.s32.totalorder %s193, 0
      %s196 = sadd.s32 %s195, 1
      %s197 = scalar_select %p194, %s195, %s196
      %p200 = pneg %p194
      %p201 = scmp.eq.s32.totalorder %s26, 1
      %p202 = por %p200, %p201
      %p203 = scmp.ne.s32.totalorder %s195, %s198
      %p204 = scmp.eq.s32.totalorder %s26, 0
      %p205 = por %p203, %p204
      %p206 = scmp.ne.s32.totalorder %s195, %s198
      %p207 = scmp.eq.s32.totalorder %s31, 1
      %p208 = por %p206, %p207
      %p209 = scmp.ne.s32.totalorder %s198, %s199
      %p210 = scmp.eq.s32.totalorder %s31, 0
      %p211 = por %p209, %p210
      %p212 = scmp.ne.s32.totalorder %s198, %s199
      %p213 = scmp.eq.s32.totalorder %s32, 1
      %p214 = por %p212, %p213
      %p216 = scmp.ne.s32.totalorder %s199, %s215
      %p217 = scmp.eq.s32.totalorder %s32, 0
      %p218 = por %p216, %p217
      %p219 = scmp.le.s32.totalorder 1, %s26
      %p220 = scmp.lt.s32.totalorder %s26, 3
      %p221 = pnand %p219, %p220
      %p222 = pneg %p221
      // Predicated region
      $region9: #{tpu_custom_call.1} parent=5 // pred_check
        _
      $region10: #{tpu_custom_call.1} parent=5 // pred_check_branch
        %224 = sbr.rel (%p221) target = $region12
      $region11: #{tpu_custom_call.1} parent=5 // pred_region
        %s225 = ssub.s32 %s26, 1
        // Predicated region
        $region13: #{tpu_custom_call.1} parent=11 // pred_check
          %p226 = pneg %p115
        $region14: #{tpu_custom_call.1} parent=11 // pred_check_branch
          %228 = sbr.rel (%p226) target = $region16
        $region15: #{tpu_custom_call.1} parent=11 // pred_region
          %230 = vsyncadd [#allocation7], 0
          %s231 = sshll.u32 %s2, 4
          %s232 = int_to_ptr.hbm [resolvable:$true] %s231
          %s233 = sshll.u32 [#allocation8], 4
          %s234 = int_to_ptr.vmem [resolvable:$true] %s233
          %239 = dma.hbm_to_vmem [thread:$0]  %s232, 6144, %s234, [#allocation7], 64, 64, 4
        $region16: #{tpu_custom_call.1} parent=11 // pred_fallthru
          _
        // Predicated region
        $region17: #{tpu_custom_call.1} parent=11 // pred_check
          %p240 = pneg %p136
        $region18: #{tpu_custom_call.1} parent=11 // pred_check_branch
          %242 = sbr.rel (%p240) target = $region20
        $region19: #{tpu_custom_call.1} parent=11 // pred_region
          _
        $region20: #{tpu_custom_call.1} parent=11 // pred_fallthru
          _
        // Predicated region
        $region21: #{tpu_custom_call.1} parent=11 // pred_check
          %p243 = pneg %p157
        $region22: #{tpu_custom_call.1} parent=11 // pred_check_branch
          %245 = sbr.rel (%p243) target = $region24
        $region23: #{tpu_custom_call.1} parent=11 // pred_region
          %247 = vsyncadd [#allocation10], 0
          %s248 = sshll.u32 %s4, 4
          %s249 = int_to_ptr.hbm [resolvable:$true] %s248
          %s250 = sshll.u32 [#allocation9], 4
          %s251 = int_to_ptr.vmem [resolvable:$true] %s250
          %256 = dma.hbm_to_vmem [thread:$0]  %s249, 12288, %s251, [#allocation10], 128, 128, 8
        $region24: #{tpu_custom_call.1} parent=11 // pred_fallthru
          _
      $region12: #{tpu_custom_call.1} parent=5 // pred_fallthru
        _
      %p257 = scmp.lt.s32.totalorder %s26, 2
      // Predicated region
      $region25: #{tpu_custom_call.1} parent=5 // pred_check
        %p258 = pneg %p257
      $region26: #{tpu_custom_call.1} parent=5 // pred_check_branch
        %260 = sbr.rel (%p258) target = $region28
      $region27: #{tpu_custom_call.1} parent=5 // pred_region
        // Predicated region
        $region29: #{tpu_custom_call.1} parent=27 // pred_check
          %p261 = pneg %p60
        $region30: #{tpu_custom_call.1} parent=27 // pred_check_branch
          %263 = sbr.rel (%p261) target = $region32
        $region31: #{tpu_custom_call.1} parent=27 // pred_region
          %s264 = sand.u32 %s50, 1
          %s265 = scalar_lea.sflag [#allocation4], %s264
          %s266 = sand.u32 %s50, 1
          %s267 = smul.addr %s266, 768
          %s268 = scalar_lea.vmem [#allocation3], %s267
          %s269 = sadd.s32 %s33, %s34
          %s270 = smul.u32 16, %s269
          %272 = vsyncadd %s265, 0
          %s273 = smul.addr %s270, 6
          %s274 = smul.addr %s273, 8
          %s275 = scalar_lea.hbm %s0, %s274
          %s276 = sshll.u32 %s275, 4
          %s277 = int_to_ptr.hbm [resolvable:$true] %s276
          %s278 = sshll.u32 %s268, 4
          %s279 = int_to_ptr.vmem [resolvable:$true] %s278
          %284 = dma.hbm_to_vmem [thread:$0]  %s277, 12288, %s279, %s265, 768, 768, 48
        $region32: #{tpu_custom_call.1} parent=27 // pred_fallthru
          _
        // Predicated region
        $region33: #{tpu_custom_call.1} parent=27 // pred_check
          %p285 = pneg %p88
        $region34: #{tpu_custom_call.1} parent=27 // pred_check_branch
          %287 = sbr.rel (%p285) target = $region36
        $region35: #{tpu_custom_call.1} parent=27 // pred_region
          %s288 = sand.u32 %s26, 1
          %s289 = scalar_lea.sflag [#allocation7], %s288
          %s290 = sand.u32 %s78, 1
          %s291 = smul.addr %s290, 8
          %s292 = scalar_lea.vmem [#allocation6], %s291
          %s293 = sadd.s32 %s33, %s34
          %295 = vsyncadd %s289, 0
          %s296 = smul.addr %s293, 4
          %s297 = scalar_lea.hbm %s1, %s296
          %s298 = sshll.u32 %s297, 4
          %s299 = int_to_ptr.hbm [resolvable:$true] %s298
          %s300 = sshll.u32 %s292, 4
          %s301 = int_to_ptr.vmem [resolvable:$true] %s300
          %306 = dma.hbm_to_vmem [thread:$0]  %s299, 128, %s301, %s289, 128, 64, 4
        $region36: #{tpu_custom_call.1} parent=27 // pred_fallthru
          _
      $region28: #{tpu_custom_call.1} parent=5 // pred_fallthru
        _
      %p307 = scmp.le.s32.totalorder 1, %s26
      %p308 = scmp.lt.s32.totalorder %s26, 3
      %p309 = pnand %p307, %p308
      %p310 = pneg %p309
      // Predicated region
      $region37: #{tpu_custom_call.1} parent=5 // pred_check
        _
      $region38: #{tpu_custom_call.1} parent=5 // pred_check_branch
        %312 = sbr.rel (%p309) target = $region40
      $region39: #{tpu_custom_call.1} parent=5 // pred_region
        %s313 = ssub.s32 %s26, 1
        %s314 = sand.u32 %s53, 1
        %s315 = scalar_lea.sflag [#allocation4], %s314
        %s316 = sand.u32 %s53, 1
        %s317 = smul.addr %s316, 768
        %s318 = scalar_lea.vmem [#allocation3], %s317
        // Predicated region
        $region41: #{tpu_custom_call.1} parent=39 // pred_check
          %p319 = pneg %p66
        $region42: #{tpu_custom_call.1} parent=39 // pred_check_branch
          %321 = sbr.rel (%p319) target = $region44
        $region43: #{tpu_custom_call.1} parent=39 // pred_region
          %323 = dma.done %s315, 12288
        $region44: #{tpu_custom_call.1} parent=39 // pred_fallthru
          _
        %s324 = sand.u32 %s31, 1
        %s325 = scalar_lea.sflag [#allocation7], %s324
        %s326 = sand.u32 %s81, 1
        %s327 = smul.addr %s326, 8
        %s328 = scalar_lea.vmem [#allocation6], %s327
        // Predicated region
        $region45: #{tpu_custom_call.1} parent=39 // pred_check
          %p329 = pneg %p94
        $region46: #{tpu_custom_call.1} parent=39 // pred_check_branch
          %331 = sbr.rel (%p329) target = $region48
        $region47: #{tpu_custom_call.1} parent=39 // pred_region
          %333 = dma.done %s325, 128
        $region48: #{tpu_custom_call.1} parent=39 // pred_fallthru
          _
        // Predicated region
        $region49: #{tpu_custom_call.1} parent=39 // pred_check
          %p334 = pneg %p115
        $region50: #{tpu_custom_call.1} parent=39 // pred_check_branch
          %336 = sbr.rel (%p334) target = $region52
        $region51: #{tpu_custom_call.1} parent=39 // pred_region
          %338 = dma.done [#allocation7], 6144
        $region52: #{tpu_custom_call.1} parent=39 // pred_fallthru
          _
        // Predicated region
        $region53: #{tpu_custom_call.1} parent=39 // pred_check
          %p339 = pneg %p157
        $region54: #{tpu_custom_call.1} parent=39 // pred_check_branch
          %341 = sbr.rel (%p339) target = $region56
        $region55: #{tpu_custom_call.1} parent=39 // pred_region
          %343 = dma.done [#allocation10], 12288
        $region56: #{tpu_custom_call.1} parent=39 // pred_fallthru
          _
        %s344 = sand.u32 %s53, 1
        %s345 = scalar_lea.sflag [#allocation4], %s344
        %s346 = sand.u32 %s53, 1
        %s347 = smul.addr %s346, 768
        %s348 = scalar_lea.vmem [#allocation3], %s347
        %p349 = pneg %p66
        %p350 = pneg %p63
        %s351 = sand.u32 %s31, 1
        %s352 = scalar_lea.sflag [#allocation7], %s351
        %s353 = sand.u32 %s81, 1
        %s354 = smul.addr %s353, 8
        %s355 = scalar_lea.vmem [#allocation6], %s354
        %p356 = pneg %p94
        %p357 = pneg %p91
        %p358 = pneg %p115
        %p359 = pneg %p112
        %p360 = pneg %p136
        %p361 = pneg %p133
        %p362 = pneg %p157
        %p363 = pneg %p154
        %p364 = pneg %p185
        %p365 = pneg %p182
        %s366 = sand.u32 %s172, 1
        %s367 = scalar_lea.sflag [#allocation5], %s366
        %s368 = sand.u32 %s172, 1
        %s369 = smul.addr %s368, 64
        %s370 = scalar_lea.vmem [#allocation11], %s369
        %p371 = pneg %p211
        %p372 = pneg %p208
        %s373 = sand.u32 %s198, 1
        %s374 = scalar_lea.sflag [#allocation13], %s373
        %s375 = sand.u32 %s198, 1
        %s376 = smul.addr %s375, 16
        %s377 = scalar_lea.vmem [#allocation12], %s376
        %s378 = sadd.s32 %s35, %s36
        %s379 = smul.u32 16, %s378
        %s380 = sadd.s32 %s35, %s36
        %s381 = sadd.s32 %s35, %s36
        %s382 = smul.u32 16, %s381
        %v383 = vld [vmem:[%s318] sm:$0xff]
        %v384 = vld [vmem:[%s318 + $0x8] sm:$0xff]
        %v385 = vld [vmem:[%s318 + $0x10] sm:$0xff]
        %v386 = vld [vmem:[%s318 + $0x18] sm:$0xff]
        %v387 = vld [vmem:[%s318 + $0x20] sm:$0xff]
        %v388 = vld [vmem:[%s318 + $0x28] sm:$0xff]
        %v389 = vld [vmem:[%s318 + $0x30] sm:$0xff]
        %v390 = vld [vmem:[%s318 + $0x38] sm:$0xff]
        %v391 = vld [vmem:[%s318 + $0x40] sm:$0xff]
        %v392 = vld [vmem:[%s318 + $0x48] sm:$0xff]
        %v393 = vld [vmem:[%s318 + $0x50] sm:$0xff]
        %v394 = vld [vmem:[%s318 + $0x58] sm:$0xff]
        %v395 = vld [vmem:[%s318 + $0x60] sm:$0xff]
        %v396 = vld [vmem:[%s318 + $0x68] sm:$0xff]
        %v397 = vld [vmem:[%s318 + $0x70] sm:$0xff]
        %v398 = vld [vmem:[%s318 + $0x78] sm:$0xff]
        %v399 = vld [vmem:[%s318 + $0x80] sm:$0xff]
        %v400 = vld [vmem:[%s318 + $0x88] sm:$0xff]
        %v401 = vld [vmem:[%s318 + $0x90] sm:$0xff]
        %v402 = vld [vmem:[%s318 + $0x98] sm:$0xff]
        %v403 = vld [vmem:[%s318 + $0xa0] sm:$0xff]
        %v404 = vld [vmem:[%s318 + $0xa8] sm:$0xff]
        %v405 = vld [vmem:[%s318 + $0xb0] sm:$0xff]
        %v406 = vld [vmem:[%s318 + $0xb8] sm:$0xff]
        %v407 = vld [vmem:[%s318 + $0xc0] sm:$0xff]
        %v408 = vld [vmem:[%s318 + $0xc8] sm:$0xff]
        %v409 = vld [vmem:[%s318 + $0xd0] sm:$0xff]
        %v410 = vld [vmem:[%s318 + $0xd8] sm:$0xff]
        %v411 = vld [vmem:[%s318 + $0xe0] sm:$0xff]
        %v412 = vld [vmem:[%s318 + $0xe8] sm:$0xff]
        %v413 = vld [vmem:[%s318 + $0xf0] sm:$0xff]
        %v414 = vld [vmem:[%s318 + $0xf8] sm:$0xff]
        %v415 = vld [vmem:[%s318 + $0x100] sm:$0xff]
        %v416 = vld [vmem:[%s318 + $0x108] sm:$0xff]
        %v417 = vld [vmem:[%s318 + $0x110] sm:$0xff]
        %v418 = vld [vmem:[%s318 + $0x118] sm:$0xff]
        %v419 = vld [vmem:[%s318 + $0x120] sm:$0xff]
        %v420 = vld [vmem:[%s318 + $0x128] sm:$0xff]
        %v421 = vld [vmem:[%s318 + $0x130] sm:$0xff]
        %v422 = vld [vmem:[%s318 + $0x138] sm:$0xff]
        %v423 = vld [vmem:[%s318 + $0x140] sm:$0xff]
        %v424 = vld [vmem:[%s318 + $0x148] sm:$0xff]
        %v425 = vld [vmem:[%s318 + $0x150] sm:$0xff]
        %v426 = vld [vmem:[%s318 + $0x158] sm:$0xff]
        %v427 = vld [vmem:[%s318 + $0x160] sm:$0xff]
        %v428 = vld [vmem:[%s318 + $0x168] sm:$0xff]
        %v429 = vld [vmem:[%s318 + $0x170] sm:$0xff]
        %v430 = vld [vmem:[%s318 + $0x178] sm:$0xff]
        %v431 = vld [vmem:[%s318 + $0x180] sm:$0xff]
        %v432 = vld [vmem:[%s318 + $0x188] sm:$0xff]
        %v433 = vld [vmem:[%s318 + $0x190] sm:$0xff]
        %v434 = vld [vmem:[%s318 + $0x198] sm:$0xff]
        %v435 = vld [vmem:[%s318 + $0x1a0] sm:$0xff]
        %v436 = vld [vmem:[%s318 + $0x1a8] sm:$0xff]
        %v437 = vld [vmem:[%s318 + $0x1b0] sm:$0xff]
        %v438 = vld [vmem:[%s318 + $0x1b8] sm:$0xff]
        %v439 = vld [vmem:[%s318 + $0x1c0] sm:$0xff]
        %v440 = vld [vmem:[%s318 + $0x1c8] sm:$0xff]
        %v441 = vld [vmem:[%s318 + $0x1d0] sm:$0xff]
        %v442 = vld [vmem:[%s318 + $0x1d8] sm:$0xff]
        %v443 = vld [vmem:[%s318 + $0x1e0] sm:$0xff]
        %v444 = vld [vmem:[%s318 + $0x1e8] sm:$0xff]
        %v445 = vld [vmem:[%s318 + $0x1f0] sm:$0xff]
        %v446 = vld [vmem:[%s318 + $0x1f8] sm:$0xff]
        %v447 = vld [vmem:[%s318 + $0x200] sm:$0xff]
        %v448 = vld [vmem:[%s318 + $0x208] sm:$0xff]
        %v449 = vld [vmem:[%s318 + $0x210] sm:$0xff]
        %v450 = vld [vmem:[%s318 + $0x218] sm:$0xff]
        %v451 = vld [vmem:[%s318 + $0x220] sm:$0xff]
        %v452 = vld [vmem:[%s318 + $0x228] sm:$0xff]
        %v453 = vld [vmem:[%s318 + $0x230] sm:$0xff]
        %v454 = vld [vmem:[%s318 + $0x238] sm:$0xff]
        %v455 = vld [vmem:[%s318 + $0x240] sm:$0xff]
        %v456 = vld [vmem:[%s318 + $0x248] sm:$0xff]
        %v457 = vld [vmem:[%s318 + $0x250] sm:$0xff]
        %v458 = vld [vmem:[%s318 + $0x258] sm:$0xff]
        %v459 = vld [vmem:[%s318 + $0x260] sm:$0xff]
        %v460 = vld [vmem:[%s318 + $0x268] sm:$0xff]
        %v461 = vld [vmem:[%s318 + $0x270] sm:$0xff]
        %v462 = vld [vmem:[%s318 + $0x278] sm:$0xff]
        %v463 = vld [vmem:[%s318 + $0x280] sm:$0xff]
        %v464 = vld [vmem:[%s318 + $0x288] sm:$0xff]
        %v465 = vld [vmem:[%s318 + $0x290] sm:$0xff]
        %v466 = vld [vmem:[%s318 + $0x298] sm:$0xff]
        %v467 = vld [vmem:[%s318 + $0x2a0] sm:$0xff]
        %v468 = vld [vmem:[%s318 + $0x2a8] sm:$0xff]
        %v469 = vld [vmem:[%s318 + $0x2b0] sm:$0xff]
        %v470 = vld [vmem:[%s318 + $0x2b8] sm:$0xff]
        %v471 = vld [vmem:[%s318 + $0x2c0] sm:$0xff]
        %v472 = vld [vmem:[%s318 + $0x2c8] sm:$0xff]
        %v473 = vld [vmem:[%s318 + $0x2d0] sm:$0xff]
        %v474 = vld [vmem:[%s318 + $0x2d8] sm:$0xff]
        %v475 = vld [vmem:[%s318 + $0x2e0] sm:$0xff]
        %v476 = vld [vmem:[%s318 + $0x2e8] sm:$0xff]
        %v477 = vld [vmem:[%s318 + $0x2f0] sm:$0xff]
        %v478 = vld [vmem:[%s318 + $0x2f8] sm:$0xff]
        %v479 = vpack.c.bf16 %v389, %v383
        %v480 = vpack.c.bf16 %v390, %v384
        %v481 = vpack.c.bf16 %v391, %v385
        %v482 = vpack.c.bf16 %v392, %v386
        %v483 = vpack.c.bf16 %v393, %v387
        %v484 = vpack.c.bf16 %v394, %v388
        %v485 = vpack.c.bf16 %v401, %v395
        %v486 = vpack.c.bf16 %v402, %v396
        %v487 = vpack.c.bf16 %v403, %v397
        %v488 = vpack.c.bf16 %v404, %v398
        %v489 = vpack.c.bf16 %v405, %v399
        %v490 = vpack.c.bf16 %v406, %v400
        %v491 = vpack.c.bf16 %v413, %v407
        %v492 = vpack.c.bf16 %v414, %v408
        %v493 = vpack.c.bf16 %v415, %v409
        %v494 = vpack.c.bf16 %v416, %v410
        %v495 = vpack.c.bf16 %v417, %v411
        %v496 = vpack.c.bf16 %v418, %v412
        %v497 = vpack.c.bf16 %v425, %v419
        %v498 = vpack.c.bf16 %v426, %v420
        %v499 = vpack.c.bf16 %v427, %v421
        %v500 = vpack.c.bf16 %v428, %v422
        %v501 = vpack.c.bf16 %v429, %v423
        %v502 = vpack.c.bf16 %v430, %v424
        %v503 = vpack.c.bf16 %v437, %v431
        %v504 = vpack.c.bf16 %v438, %v432
        %v505 = vpack.c.bf16 %v439, %v433
        %v506 = vpack.c.bf16 %v440, %v434
        %v507 = vpack.c.bf16 %v441, %v435
        %v508 = vpack.c.bf16 %v442, %v436
        %v509 = vpack.c.bf16 %v449, %v443
        %v510 = vpack.c.bf16 %v450, %v444
        %v511 = vpack.c.bf16 %v451, %v445
        %v512 = vpack.c.bf16 %v452, %v446
        %v513 = vpack.c.bf16 %v453, %v447
        %v514 = vpack.c.bf16 %v454, %v448
        %v515 = vpack.c.bf16 %v461, %v455
        %v516 = vpack.c.bf16 %v462, %v456
        %v517 = vpack.c.bf16 %v463, %v457
        %v518 = vpack.c.bf16 %v464, %v458
        %v519 = vpack.c.bf16 %v465, %v459
        %v520 = vpack.c.bf16 %v466, %v460
        %v521 = vpack.c.bf16 %v473, %v467
        %v522 = vpack.c.bf16 %v474, %v468
        %v523 = vpack.c.bf16 %v475, %v469
        %v524 = vpack.c.bf16 %v476, %v470
        %v525 = vpack.c.bf16 %v477, %v471
        %v526 = vpack.c.bf16 %v478, %v472
        %v527 = vld [vmem:[#allocation8] sm:$0xf]
        %v528 = vld [vmem:[#allocation8 + $0x4] sm:$0xf]
        %v529 = vld [vmem:[#allocation8 + $0x8] sm:$0xf]
        %v530 = vld [vmem:[#allocation8 + $0xc] sm:$0xf]
        %v531 = vld [vmem:[#allocation8 + $0x10] sm:$0xf]
        %v532 = vld [vmem:[#allocation8 + $0x14] sm:$0xf]
        %v533 = vld [vmem:[#allocation8 + $0x18] sm:$0xf]
        %v534 = vld [vmem:[#allocation8 + $0x1c] sm:$0xf]
        %v535 = vld [vmem:[#allocation8 + $0x20] sm:$0xf]
        %v536 = vld [vmem:[#allocation8 + $0x24] sm:$0xf]
        %v537 = vld [vmem:[#allocation8 + $0x28] sm:$0xf]
        %v538 = vld [vmem:[#allocation8 + $0x2c] sm:$0xf]
        %v539 = vld [vmem:[#allocation8 + $0x30] sm:$0xf]
        %v540 = vld [vmem:[#allocation8 + $0x34] sm:$0xf]
        %v541 = vld [vmem:[#allocation8 + $0x38] sm:$0xf]
        %v542 = vld [vmem:[#allocation8 + $0x3c] sm:$0xf]
        %v543 = vld [vmem:[#allocation8 + $0x40] sm:$0xf]
        %v544 = vld [vmem:[#allocation8 + $0x44] sm:$0xf]
        %v545 = vld [vmem:[#allocation8 + $0x48] sm:$0xf]
        %v546 = vld [vmem:[#allocation8 + $0x4c] sm:$0xf]
        %v547 = vld [vmem:[#allocation8 + $0x50] sm:$0xf]
        %v548 = vld [vmem:[#allocation8 + $0x54] sm:$0xf]
        %v549 = vld [vmem:[#allocation8 + $0x58] sm:$0xf]
        %v550 = vld [vmem:[#allocation8 + $0x5c] sm:$0xf]
        %v551 = vld [vmem:[#allocation8 + $0x60] sm:$0xf]
        %v552 = vld [vmem:[#allocation8 + $0x64] sm:$0xf]
        %v553 = vld [vmem:[#allocation8 + $0x68] sm:$0xf]
        %v554 = vld [vmem:[#allocation8 + $0x6c] sm:$0xf]
        %v555 = vld [vmem:[#allocation8 + $0x70] sm:$0xf]
        %v556 = vld [vmem:[#allocation8 + $0x74] sm:$0xf]
        %v557 = vld [vmem:[#allocation8 + $0x78] sm:$0xf]
        %v558 = vld [vmem:[#allocation8 + $0x7c] sm:$0xf]
        %v559 = vld [vmem:[#allocation8 + $0x80] sm:$0xf]
        %v560 = vld [vmem:[#allocation8 + $0x84] sm:$0xf]
        %v561 = vld [vmem:[#allocation8 + $0x88] sm:$0xf]
        %v562 = vld [vmem:[#allocation8 + $0x8c] sm:$0xf]
        %v563 = vld [vmem:[#allocation8 + $0x90] sm:$0xf]
        %v564 = vld [vmem:[#allocation8 + $0x94] sm:$0xf]
        %v565 = vld [vmem:[#allocation8 + $0x98] sm:$0xf]
        %v566 = vld [vmem:[#allocation8 + $0x9c] sm:$0xf]
        %v567 = vld [vmem:[#allocation8 + $0xa0] sm:$0xf]
        %v568 = vld [vmem:[#allocation8 + $0xa4] sm:$0xf]
        %v569 = vld [vmem:[#allocation8 + $0xa8] sm:$0xf]
        %v570 = vld [vmem:[#allocation8 + $0xac] sm:$0xf]
        %v571 = vld [vmem:[#allocation8 + $0xb0] sm:$0xf]
        %v572 = vld [vmem:[#allocation8 + $0xb4] sm:$0xf]
        %v573 = vld [vmem:[#allocation8 + $0xb8] sm:$0xf]
        %v574 = vld [vmem:[#allocation8 + $0xbc] sm:$0xf]
        %v575 = vld [vmem:[#allocation8 + $0xc0] sm:$0xf]
        %v576 = vld [vmem:[#allocation8 + $0xc4] sm:$0xf]
        %v577 = vld [vmem:[#allocation8 + $0xc8] sm:$0xf]
        %v578 = vld [vmem:[#allocation8 + $0xcc] sm:$0xf]
        %v579 = vld [vmem:[#allocation8 + $0xd0] sm:$0xf]
        %v580 = vld [vmem:[#allocation8 + $0xd4] sm:$0xf]
        %v581 = vld [vmem:[#allocation8 + $0xd8] sm:$0xf]
        %v582 = vld [vmem:[#allocation8 + $0xdc] sm:$0xf]
        %v583 = vld [vmem:[#allocation8 + $0xe0] sm:$0xf]
        %v584 = vld [vmem:[#allocation8 + $0xe4] sm:$0xf]
        %v585 = vld [vmem:[#allocation8 + $0xe8] sm:$0xf]
        %v586 = vld [vmem:[#allocation8 + $0xec] sm:$0xf]
        %v587 = vld [vmem:[#allocation8 + $0xf0] sm:$0xf]
        %v588 = vld [vmem:[#allocation8 + $0xf4] sm:$0xf]
        %v589 = vld [vmem:[#allocation8 + $0xf8] sm:$0xf]
        %v590 = vld [vmem:[#allocation8 + $0xfc] sm:$0xf]
        %v591 = vld [vmem:[#allocation8 + $0x100] sm:$0xf]
        %v592 = vld [vmem:[#allocation8 + $0x104] sm:$0xf]
        %v593 = vld [vmem:[#allocation8 + $0x108] sm:$0xf]
        %v594 = vld [vmem:[#allocation8 + $0x10c] sm:$0xf]
        %v595 = vld [vmem:[#allocation8 + $0x110] sm:$0xf]
        %v596 = vld [vmem:[#allocation8 + $0x114] sm:$0xf]
        %v597 = vld [vmem:[#allocation8 + $0x118] sm:$0xf]
        %v598 = vld [vmem:[#allocation8 + $0x11c] sm:$0xf]
        %v599 = vld [vmem:[#allocation8 + $0x120] sm:$0xf]
        %v600 = vld [vmem:[#allocation8 + $0x124] sm:$0xf]
        %v601 = vld [vmem:[#allocation8 + $0x128] sm:$0xf]
        %v602 = vld [vmem:[#allocation8 + $0x12c] sm:$0xf]
        %v603 = vld [vmem:[#allocation8 + $0x130] sm:$0xf]
        %v604 = vld [vmem:[#allocation8 + $0x134] sm:$0xf]
        %v605 = vld [vmem:[#allocation8 + $0x138] sm:$0xf]
        %v606 = vld [vmem:[#allocation8 + $0x13c] sm:$0xf]
        %v607 = vld [vmem:[#allocation8 + $0x140] sm:$0xf]
        %v608 = vld [vmem:[#allocation8 + $0x144] sm:$0xf]
        %v609 = vld [vmem:[#allocation8 + $0x148] sm:$0xf]
        %v610 = vld [vmem:[#allocation8 + $0x14c] sm:$0xf]
        %v611 = vld [vmem:[#allocation8 + $0x150] sm:$0xf]
        %v612 = vld [vmem:[#allocation8 + $0x154] sm:$0xf]
        %v613 = vld [vmem:[#allocation8 + $0x158] sm:$0xf]
        %v614 = vld [vmem:[#allocation8 + $0x15c] sm:$0xf]
        %v615 = vld [vmem:[#allocation8 + $0x160] sm:$0xf]
        %v616 = vld [vmem:[#allocation8 + $0x164] sm:$0xf]
        %v617 = vld [vmem:[#allocation8 + $0x168] sm:$0xf]
        %v618 = vld [vmem:[#allocation8 + $0x16c] sm:$0xf]
        %v619 = vld [vmem:[#allocation8 + $0x170] sm:$0xf]
        %v620 = vld [vmem:[#allocation8 + $0x174] sm:$0xf]
        %v621 = vld [vmem:[#allocation8 + $0x178] sm:$0xf]
        %v622 = vld [vmem:[#allocation8 + $0x17c] sm:$0xf]
        %v623 = vld [vmem:[%s3] sm:$0x1]
        %v625 = vperm.slane %v623, 0
        %v723 = vunpack.c.l.b16 %v527
        %v724 = vunpack.c.l.b16 %v528
        %v725 = vunpack.c.l.b16 %v529
        %v726 = vunpack.c.l.b16 %v530
        %v727 = vunpack.c.l.b16 %v531
        %v728 = vunpack.c.l.b16 %v532
        %v729 = vunpack.c.l.b16 %v533
        %v730 = vunpack.c.l.b16 %v534
        %v731 = vunpack.c.l.b16 %v535
        %v732 = vunpack.c.l.b16 %v536
        %v733 = vunpack.c.l.b16 %v537
        %v734 = vunpack.c.l.b16 %v538
        %v735 = vunpack.c.l.b16 %v539
        %v736 = vunpack.c.l.b16 %v540
        %v737 = vunpack.c.l.b16 %v541
        %v738 = vunpack.c.l.b16 %v542
        %v739 = vunpack.c.l.b16 %v543
        %v740 = vunpack.c.l.b16 %v544
        %v741 = vunpack.c.l.b16 %v545
        %v742 = vunpack.c.l.b16 %v546
        %v743 = vunpack.c.l.b16 %v547
        %v744 = vunpack.c.l.b16 %v548
        %v745 = vunpack.c.l.b16 %v549
        %v746 = vunpack.c.l.b16 %v550
        %v747 = vunpack.c.l.b16 %v551
        %v748 = vunpack.c.l.b16 %v552
        %v749 = vunpack.c.l.b16 %v553
        %v750 = vunpack.c.l.b16 %v554
        %v751 = vunpack.c.l.b16 %v555
        %v752 = vunpack.c.l.b16 %v556
        %v753 = vunpack.c.l.b16 %v557
        %v754 = vunpack.c.l.b16 %v558
        %v755 = vunpack.c.l.b16 %v559
        %v756 = vunpack.c.l.b16 %v560
        %v757 = vunpack.c.l.b16 %v561
        %v758 = vunpack.c.l.b16 %v562
        %v759 = vunpack.c.l.b16 %v563
        %v760 = vunpack.c.l.b16 %v564
        %v761 = vunpack.c.l.b16 %v565
        %v762 = vunpack.c.l.b16 %v566
        %v763 = vunpack.c.l.b16 %v567
        %v764 = vunpack.c.l.b16 %v568
        %v765 = vunpack.c.l.b16 %v569
        %v766 = vunpack.c.l.b16 %v570
        %v767 = vunpack.c.l.b16 %v571
        %v768 = vunpack.c.l.b16 %v572
        %v769 = vunpack.c.l.b16 %v573
        %v770 = vunpack.c.l.b16 %v574
        %v771 = vunpack.c.l.b16 %v575
        %v772 = vunpack.c.l.b16 %v576
        %v773 = vunpack.c.l.b16 %v577
        %v774 = vunpack.c.l.b16 %v578
        %v775 = vunpack.c.l.b16 %v579
        %v776 = vunpack.c.l.b16 %v580
        %v777 = vunpack.c.l.b16 %v581
        %v778 = vunpack.c.l.b16 %v582
        %v779 = vunpack.c.l.b16 %v583
        %v780 = vunpack.c.l.b16 %v584
        %v781 = vunpack.c.l.b16 %v585
        %v782 = vunpack.c.l.b16 %v586
        %v783 = vunpack.c.l.b16 %v587
        %v784 = vunpack.c.l.b16 %v588
        %v785 = vunpack.c.l.b16 %v589
        %v786 = vunpack.c.l.b16 %v590
        %v787 = vunpack.c.l.b16 %v591
        %v788 = vunpack.c.l.b16 %v592
        %v789 = vunpack.c.l.b16 %v593
        %v790 = vunpack.c.l.b16 %v594
        %v791 = vunpack.c.l.b16 %v595
        %v792 = vunpack.c.l.b16 %v596
        %v793 = vunpack.c.l.b16 %v597
        %v794 = vunpack.c.l.b16 %v598
        %v795 = vunpack.c.l.b16 %v599
        %v796 = vunpack.c.l.b16 %v600
        %v797 = vunpack.c.l.b16 %v601
        %v798 = vunpack.c.l.b16 %v602
        %v799 = vunpack.c.l.b16 %v603
        %v800 = vunpack.c.l.b16 %v604
        %v801 = vunpack.c.l.b16 %v605
        %v802 = vunpack.c.l.b16 %v606
        %v803 = vunpack.c.l.b16 %v607
        %v804 = vunpack.c.l.b16 %v608
        %v805 = vunpack.c.l.b16 %v609
        %v806 = vunpack.c.l.b16 %v610
        %v807 = vunpack.c.l.b16 %v611
        %v808 = vunpack.c.l.b16 %v612
        %v809 = vunpack.c.l.b16 %v613
        %v810 = vunpack.c.l.b16 %v614
        %v811 = vunpack.c.l.b16 %v615
        %v812 = vunpack.c.l.b16 %v616
        %v813 = vunpack.c.l.b16 %v617
        %v814 = vunpack.c.l.b16 %v618
        %v815 = vunpack.c.l.b16 %v619
        %v816 = vunpack.c.l.b16 %v620
        %v817 = vunpack.c.l.b16 %v621
        %v818 = vunpack.c.l.b16 %v622
        %v819 = vpack.c.b16 %v724, %v723
        %v820 = vpack.c.b16 %v726, %v725
        %v821 = vpack.c.b16 %v728, %v727
        %v822 = vpack.c.b16 %v730, %v729
        %v823 = vpack.c.b16 %v732, %v731
        %v824 = vpack.c.b16 %v734, %v733
        %v825 = vpack.c.b16 %v736, %v735
        %v826 = vpack.c.b16 %v738, %v737
        %v827 = vpack.c.b16 %v740, %v739
        %v828 = vpack.c.b16 %v742, %v741
        %v829 = vpack.c.b16 %v744, %v743
        %v830 = vpack.c.b16 %v746, %v745
        %v831 = vpack.c.b16 %v748, %v747
        %v832 = vpack.c.b16 %v750, %v749
        %v833 = vpack.c.b16 %v752, %v751
        %v834 = vpack.c.b16 %v754, %v753
        %v835 = vpack.c.b16 %v756, %v755
        %v836 = vpack.c.b16 %v758, %v757
        %v837 = vpack.c.b16 %v760, %v759
        %v838 = vpack.c.b16 %v762, %v761
        %v839 = vpack.c.b16 %v764, %v763
        %v840 = vpack.c.b16 %v766, %v765
        %v841 = vpack.c.b16 %v768, %v767
        %v842 = vpack.c.b16 %v770, %v769
        %v843 = vpack.c.b16 %v772, %v771
        %v844 = vpack.c.b16 %v774, %v773
        %v845 = vpack.c.b16 %v776, %v775
        %v846 = vpack.c.b16 %v778, %v777
        %v847 = vpack.c.b16 %v780, %v779
        %v848 = vpack.c.b16 %v782, %v781
        %v849 = vpack.c.b16 %v784, %v783
        %v850 = vpack.c.b16 %v786, %v785
        %v851 = vpack.c.b16 %v788, %v787
        %v852 = vpack.c.b16 %v790, %v789
        %v853 = vpack.c.b16 %v792, %v791
        %v854 = vpack.c.b16 %v794, %v793
        %v855 = vpack.c.b16 %v796, %v795
        %v856 = vpack.c.b16 %v798, %v797
        %v857 = vpack.c.b16 %v800, %v799
        %v858 = vpack.c.b16 %v802, %v801
        %v859 = vpack.c.b16 %v804, %v803
        %v860 = vpack.c.b16 %v806, %v805
        %v861 = vpack.c.b16 %v808, %v807
        %v862 = vpack.c.b16 %v810, %v809
        %v863 = vpack.c.b16 %v812, %v811
        %v864 = vpack.c.b16 %v814, %v813
        %v865 = vpack.c.b16 %v816, %v815
        %v866 = vpack.c.b16 %v818, %v817
        %915 = vmatpush.bf16.msra.mxu0 %v826
        %916 = vmatpush.bf16.msra.mxu0 %v825
        %917 = vmatpush.bf16.msra.mxu0 %v824
        %918 = vmatpush.bf16.msra.mxu0 %v823
        %919 = vmatpush.bf16.msra.mxu0 %v822
        %920 = vmatpush.bf16.msra.mxu0 %v821
        %921 = vmatpush.bf16.msra.mxu0 %v820
        %922 = vmatpush.bf16.msra.mxu0 %v819
        %923 = vmatmul.bf16.gmra.mxu0 %v479
        %v924 = vpop.f32.mrf.mxu0
        %v925 = vadd.f32 %v625, %v924
        %v926 = vpop.f32.mrf.mxu0
        %v927 = vadd.f32 %v625, %v926
        %928 = vmatmul.bf16.gmra.mxu0 %v485
        %v929 = vpop.f32.mrf.mxu0
        %v930 = vadd.f32 %v625, %v929
        %v931 = vpop.f32.mrf.mxu0
        %v932 = vadd.f32 %v625, %v931
        %933 = vmatmul.bf16.gmra.mxu0 %v491
        %v934 = vpop.f32.mrf.mxu0
        %v935 = vadd.f32 %v625, %v934
        %v936 = vpop.f32.mrf.mxu0
        %v937 = vadd.f32 %v625, %v936
        %938 = vmatmul.bf16.gmra.mxu0 %v497
        %v939 = vpop.f32.mrf.mxu0
        %v940 = vadd.f32 %v625, %v939
        %v941 = vpop.f32.mrf.mxu0
        %v942 = vadd.f32 %v625, %v941
        %943 = vmatmul.bf16.gmra.mxu0 %v503
        %v944 = vpop.f32.mrf.mxu0
        %v945 = vadd.f32 %v625, %v944
        %v946 = vpop.f32.mrf.mxu0
        %v947 = vadd.f32 %v625, %v946
        %948 = vmatmul.bf16.gmra.mxu0 %v509
        %v949 = vpop.f32.mrf.mxu0
        %v950 = vadd.f32 %v625, %v949
        %v951 = vpop.f32.mrf.mxu0
        %v952 = vadd.f32 %v625, %v951
        %953 = vmatmul.bf16.gmra.mxu0 %v515
        %v954 = vpop.f32.mrf.mxu0
        %v955 = vadd.f32 %v625, %v954
        %v956 = vpop.f32.mrf.mxu0
        %v957 = vadd.f32 %v625, %v956
        %958 = vmatmul.bf16.gmra.mxu0 %v521
        %v959 = vpop.f32.mrf.mxu0
        %v960 = vadd.f32 %v625, %v959
        %v961 = vpop.f32.mrf.mxu0
        %v962 = vadd.f32 %v625, %v961
        %963 = vdwg.mxu0
        %964 = vmatpush.bf16.msra.mxu0 %v834
        %965 = vmatpush.bf16.msra.mxu0 %v833
        %966 = vmatpush.bf16.msra.mxu0 %v832
        %967 = vmatpush.bf16.msra.mxu0 %v831
        %968 = vmatpush.bf16.msra.mxu0 %v830
        %969 = vmatpush.bf16.msra.mxu0 %v829
        %970 = vmatpush.bf16.msra.mxu0 %v828
        %971 = vmatpush.bf16.msra.mxu0 %v827
        %972 = vmatmul.bf16.gmra.mxu0 %v480
        %v973 = vpop.f32.mrf.mxu0
        %v974 = vadd.f32 %v925, %v973
        %v975 = vpop.f32.mrf.mxu0
        %v976 = vadd.f32 %v927, %v975
        %977 = vmatmul.bf16.gmra.mxu0 %v486
        %v978 = vpop.f32.mrf.mxu0
        %v979 = vadd.f32 %v930, %v978
        %v980 = vpop.f32.mrf.mxu0
        %v981 = vadd.f32 %v932, %v980
        %982 = vmatmul.bf16.gmra.mxu0 %v492
        %v983 = vpop.f32.mrf.mxu0
        %v984 = vadd.f32 %v935, %v983
        %v985 = vpop.f32.mrf.mxu0
        %v986 = vadd.f32 %v937, %v985
        %987 = vmatmul.bf16.gmra.mxu0 %v498
        %v988 = vpop.f32.mrf.mxu0
        %v989 = vadd.f32 %v940, %v988
        %v990 = vpop.f32.mrf.mxu0
        %v991 = vadd.f32 %v942, %v990
        %992 = vmatmul.bf16.gmra.mxu0 %v504
        %v993 = vpop.f32.mrf.mxu0
        %v994 = vadd.f32 %v945, %v993
        %v995 = vpop.f32.mrf.mxu0
        %v996 = vadd.f32 %v947, %v995
        %997 = vmatmul.bf16.gmra.mxu0 %v510
        %v998 = vpop.f32.mrf.mxu0
        %v999 = vadd.f32 %v950, %v998
        %v1000 = vpop.f32.mrf.mxu0
        %v1001 = vadd.f32 %v952, %v1000
        %1002 = vmatmul.bf16.gmra.mxu0 %v516
        %v1003 = vpop.f32.mrf.mxu0
        %v1004 = vadd.f32 %v955, %v1003
        %v1005 = vpop.f32.mrf.mxu0
        %v1006 = vadd.f32 %v957, %v1005
        %1007 = vmatmul.bf16.gmra.mxu0 %v522
        %v1008 = vpop.f32.mrf.mxu0
        %v1009 = vadd.f32 %v960, %v1008
        %v1010 = vpop.f32.mrf.mxu0
        %v1011 = vadd.f32 %v962, %v1010
        %1012 = vdwg.mxu0
        %1013 = vmatpush.bf16.msra.mxu0 %v842
        %1014 = vmatpush.bf16.msra.mxu0 %v841
        %1015 = vmatpush.bf16.msra.mxu0 %v840
        %1016 = vmatpush.bf16.msra.mxu0 %v839
        %1017 = vmatpush.bf16.msra.mxu0 %v838
        %1018 = vmatpush.bf16.msra.mxu0 %v837
        %1019 = vmatpush.bf16.msra.mxu0 %v836
        %1020 = vmatpush.bf16.msra.mxu0 %v835
        %1021 = vmatmul.bf16.gmra.mxu0 %v481
        %v1022 = vpop.f32.mrf.mxu0
        %v1023 = vadd.f32 %v974, %v1022
        %v1024 = vpop.f32.mrf.mxu0
        %v1025 = vadd.f32 %v976, %v1024
        %1026 = vmatmul.bf16.gmra.mxu0 %v487
        %v1027 = vpop.f32.mrf.mxu0
        %v1028 = vadd.f32 %v979, %v1027
        %v1029 = vpop.f32.mrf.mxu0
        %v1030 = vadd.f32 %v981, %v1029
        %1031 = vmatmul.bf16.gmra.mxu0 %v493
        %v1032 = vpop.f32.mrf.mxu0
        %v1033 = vadd.f32 %v984, %v1032
        %v1034 = vpop.f32.mrf.mxu0
        %v1035 = vadd.f32 %v986, %v1034
        %1036 = vmatmul.bf16.gmra.mxu0 %v499
        %v1037 = vpop.f32.mrf.mxu0
        %v1038 = vadd.f32 %v989, %v1037
        %v1039 = vpop.f32.mrf.mxu0
        %v1040 = vadd.f32 %v991, %v1039
        %1041 = vmatmul.bf16.gmra.mxu0 %v505
        %v1042 = vpop.f32.mrf.mxu0
        %v1043 = vadd.f32 %v994, %v1042
        %v1044 = vpop.f32.mrf.mxu0
        %v1045 = vadd.f32 %v996, %v1044
        %1046 = vmatmul.bf16.gmra.mxu0 %v511
        %v1047 = vpop.f32.mrf.mxu0
        %v1048 = vadd.f32 %v999, %v1047
        %v1049 = vpop.f32.mrf.mxu0
        %v1050 = vadd.f32 %v1001, %v1049
        %1051 = vmatmul.bf16.gmra.mxu0 %v517
        %v1052 = vpop.f32.mrf.mxu0
        %v1053 = vadd.f32 %v1004, %v1052
        %v1054 = vpop.f32.mrf.mxu0
        %v1055 = vadd.f32 %v1006, %v1054
        %1056 = vmatmul.bf16.gmra.mxu0 %v523
        %v1057 = vpop.f32.mrf.mxu0
        %v1058 = vadd.f32 %v1009, %v1057
        %v1059 = vpop.f32.mrf.mxu0
        %v1060 = vadd.f32 %v1011, %v1059
        %1061 = vdwg.mxu0
        %1062 = vmatpush.bf16.msra.mxu0 %v850
        %1063 = vmatpush.bf16.msra.mxu0 %v849
        %1064 = vmatpush.bf16.msra.mxu0 %v848
        %1065 = vmatpush.bf16.msra.mxu0 %v847
        %1066 = vmatpush.bf16.msra.mxu0 %v846
        %1067 = vmatpush.bf16.msra.mxu0 %v845
        %1068 = vmatpush.bf16.msra.mxu0 %v844
        %1069 = vmatpush.bf16.msra.mxu0 %v843
        %1070 = vmatmul.bf16.gmra.mxu0 %v482
        %v1071 = vpop.f32.mrf.mxu0
        %v1072 = vadd.f32 %v1023, %v1071
        %v1073 = vpop.f32.mrf.mxu0
        %v1074 = vadd.f32 %v1025, %v1073
        %1075 = vmatmul.bf16.gmra.mxu0 %v488
        %v1076 = vpop.f32.mrf.mxu0
        %v1077 = vadd.f32 %v1028, %v1076
        %v1078 = vpop.f32.mrf.mxu0
        %v1079 = vadd.f32 %v1030, %v1078
        %1080 = vmatmul.bf16.gmra.mxu0 %v494
        %v1081 = vpop.f32.mrf.mxu0
        %v1082 = vadd.f32 %v1033, %v1081
        %v1083 = vpop.f32.mrf.mxu0
        %v1084 = vadd.f32 %v1035, %v1083
        %1085 = vmatmul.bf16.gmra.mxu0 %v500
        %v1086 = vpop.f32.mrf.mxu0
        %v1087 = vadd.f32 %v1038, %v1086
        %v1088 = vpop.f32.mrf.mxu0
        %v1089 = vadd.f32 %v1040, %v1088
        %1090 = vmatmul.bf16.gmra.mxu0 %v506
        %v1091 = vpop.f32.mrf.mxu0
        %v1092 = vadd.f32 %v1043, %v1091
        %v1093 = vpop.f32.mrf.mxu0
        %v1094 = vadd.f32 %v1045, %v1093
        %1095 = vmatmul.bf16.gmra.mxu0 %v512
        %v1096 = vpop.f32.mrf.mxu0
        %v1097 = vadd.f32 %v1048, %v1096
        %v1098 = vpop.f32.mrf.mxu0
        %v1099 = vadd.f32 %v1050, %v1098
        %1100 = vmatmul.bf16.gmra.mxu0 %v518
        %v1101 = vpop.f32.mrf.mxu0
        %v1102 = vadd.f32 %v1053, %v1101
        %v1103 = vpop.f32.mrf.mxu0
        %v1104 = vadd.f32 %v1055, %v1103
        %1105 = vmatmul.bf16.gmra.mxu0 %v524
        %v1106 = vpop.f32.mrf.mxu0
        %v1107 = vadd.f32 %v1058, %v1106
        %v1108 = vpop.f32.mrf.mxu0
        %v1109 = vadd.f32 %v1060, %v1108
        %1110 = vdwg.mxu0
        %1111 = vmatpush.bf16.msra.mxu0 %v858
        %1112 = vmatpush.bf16.msra.mxu0 %v857
        %1113 = vmatpush.bf16.msra.mxu0 %v856
        %1114 = vmatpush.bf16.msra.mxu0 %v855
        %1115 = vmatpush.bf16.msra.mxu0 %v854
        %1116 = vmatpush.bf16.msra.mxu0 %v853
        %1117 = vmatpush.bf16.msra.mxu0 %v852
        %1118 = vmatpush.bf16.msra.mxu0 %v851
        %1119 = vmatmul.bf16.gmra.mxu0 %v483
        %v1120 = vpop.f32.mrf.mxu0
        %v1121 = vadd.f32 %v1072, %v1120
        %v1122 = vpop.f32.mrf.mxu0
        %v1123 = vadd.f32 %v1074, %v1122
        %1124 = vmatmul.bf16.gmra.mxu0 %v489
        %v1125 = vpop.f32.mrf.mxu0
        %v1126 = vadd.f32 %v1077, %v1125
        %v1127 = vpop.f32.mrf.mxu0
        %v1128 = vadd.f32 %v1079, %v1127
        %1129 = vmatmul.bf16.gmra.mxu0 %v495
        %v1130 = vpop.f32.mrf.mxu0
        %v1131 = vadd.f32 %v1082, %v1130
        %v1132 = vpop.f32.mrf.mxu0
        %v1133 = vadd.f32 %v1084, %v1132
        %1134 = vmatmul.bf16.gmra.mxu0 %v501
        %v1135 = vpop.f32.mrf.mxu0
        %v1136 = vadd.f32 %v1087, %v1135
        %v1137 = vpop.f32.mrf.mxu0
        %v1138 = vadd.f32 %v1089, %v1137
        %1139 = vmatmul.bf16.gmra.mxu0 %v507
        %v1140 = vpop.f32.mrf.mxu0
        %v1141 = vadd.f32 %v1092, %v1140
        %v1142 = vpop.f32.mrf.mxu0
        %v1143 = vadd.f32 %v1094, %v1142
        %1144 = vmatmul.bf16.gmra.mxu0 %v513
        %v1145 = vpop.f32.mrf.mxu0
        %v1146 = vadd.f32 %v1097, %v1145
        %v1147 = vpop.f32.mrf.mxu0
        %v1148 = vadd.f32 %v1099, %v1147
        %1149 = vmatmul.bf16.gmra.mxu0 %v519
        %v1150 = vpop.f32.mrf.mxu0
        %v1151 = vadd.f32 %v1102, %v1150
        %v1152 = vpop.f32.mrf.mxu0
        %v1153 = vadd.f32 %v1104, %v1152
        %1154 = vmatmul.bf16.gmra.mxu0 %v525
        %v1155 = vpop.f32.mrf.mxu0
        %v1156 = vadd.f32 %v1107, %v1155
        %v1157 = vpop.f32.mrf.mxu0
        %v1158 = vadd.f32 %v1109, %v1157
        %1159 = vdwg.mxu0
        %1160 = vmatpush.bf16.msra.mxu0 %v866
        %1161 = vmatpush.bf16.msra.mxu0 %v865
        %1162 = vmatpush.bf16.msra.mxu0 %v864
        %1163 = vmatpush.bf16.msra.mxu0 %v863
        %1164 = vmatpush.bf16.msra.mxu0 %v862
        %1165 = vmatpush.bf16.msra.mxu0 %v861
        %1166 = vmatpush.bf16.msra.mxu0 %v860
        %1167 = vmatpush.bf16.msra.mxu0 %v859
        %1168 = vmatmul.bf16.gmra.mxu0 %v484
        %v1169 = vpop.f32.mrf.mxu0
        %v1170 = vadd.f32 %v1121, %v1169
        %v1171 = vpop.f32.mrf.mxu0
        %v1172 = vadd.f32 %v1123, %v1171
        %1173 = vmatmul.bf16.gmra.mxu0 %v490
        %v1174 = vpop.f32.mrf.mxu0
        %v1175 = vadd.f32 %v1126, %v1174
        %v1176 = vpop.f32.mrf.mxu0
        %v1177 = vadd.f32 %v1128, %v1176
        %1178 = vmatmul.bf16.gmra.mxu0 %v496
        %v1179 = vpop.f32.mrf.mxu0
        %v1180 = vadd.f32 %v1131, %v1179
        %v1181 = vpop.f32.mrf.mxu0
        %v1182 = vadd.f32 %v1133, %v1181
        %1183 = vmatmul.bf16.gmra.mxu0 %v502
        %v1184 = vpop.f32.mrf.mxu0
        %v1185 = vadd.f32 %v1136, %v1184
        %v1186 = vpop.f32.mrf.mxu0
        %v1187 = vadd.f32 %v1138, %v1186
        %1188 = vmatmul.bf16.gmra.mxu0 %v508
        %v1189 = vpop.f32.mrf.mxu0
        %v1190 = vadd.f32 %v1141, %v1189
        %v1191 = vpop.f32.mrf.mxu0
        %v1192 = vadd.f32 %v1143, %v1191
        %1193 = vmatmul.bf16.gmra.mxu0 %v514
        %v1194 = vpop.f32.mrf.mxu0
        %v1195 = vadd.f32 %v1146, %v1194
        %v1196 = vpop.f32.mrf.mxu0
        %v1197 = vadd.f32 %v1148, %v1196
        %1198 = vmatmul.bf16.gmra.mxu0 %v520
        %v1199 = vpop.f32.mrf.mxu0
        %v1200 = vadd.f32 %v1151, %v1199
        %v1201 = vpop.f32.mrf.mxu0
        %v1202 = vadd.f32 %v1153, %v1201
        %1203 = vmatmul.bf16.gmra.mxu0 %v526
        %v1204 = vpop.f32.mrf.mxu0
        %v1205 = vadd.f32 %v1156, %v1204
        %v1206 = vpop.f32.mrf.mxu0
        %v1207 = vadd.f32 %v1158, %v1206
        %1208 = vdwg.mxu0
        %v1209 = vpack.c.bf16 %v1170, %v1170
        %v1210 = vpack.c.bf16 %v1172, %v1172
        %v1211 = vpack.c.bf16 %v1175, %v1175
        %v1212 = vpack.c.bf16 %v1177, %v1177
        %v1213 = vpack.c.bf16 %v1180, %v1180
        %v1214 = vpack.c.bf16 %v1182, %v1182
        %v1215 = vpack.c.bf16 %v1185, %v1185
        %v1216 = vpack.c.bf16 %v1187, %v1187
        %v1217 = vpack.c.bf16 %v1190, %v1190
        %v1218 = vpack.c.bf16 %v1192, %v1192
        %v1219 = vpack.c.bf16 %v1195, %v1195
        %v1220 = vpack.c.bf16 %v1197, %v1197
        %v1221 = vpack.c.bf16 %v1200, %v1200
        %v1222 = vpack.c.bf16 %v1202, %v1202
        %v1223 = vpack.c.bf16 %v1205, %v1205
        %v1224 = vpack.c.bf16 %v1207, %v1207
        %1225 = vst [vmem:[%s370] sm:$0xf] %v1209
        %1226 = vst [vmem:[%s370 + $0x4] sm:$0xf] %v1210
        %1227 = vst [vmem:[%s370 + $0x8] sm:$0xf] %v1211
        %1228 = vst [vmem:[%s370 + $0xc] sm:$0xf] %v1212
        %1229 = vst [vmem:[%s370 + $0x10] sm:$0xf] %v1213
        %1230 = vst [vmem:[%s370 + $0x14] sm:$0xf] %v1214
        %1231 = vst [vmem:[%s370 + $0x18] sm:$0xf] %v1215
        %1232 = vst [vmem:[%s370 + $0x1c] sm:$0xf] %v1216
        %1233 = vst [vmem:[%s370 + $0x20] sm:$0xf] %v1217
        %1234 = vst [vmem:[%s370 + $0x24] sm:$0xf] %v1218
        %1235 = vst [vmem:[%s370 + $0x28] sm:$0xf] %v1219
        %1236 = vst [vmem:[%s370 + $0x2c] sm:$0xf] %v1220
        %1237 = vst [vmem:[%s370 + $0x30] sm:$0xf] %v1221
        %1238 = vst [vmem:[%s370 + $0x34] sm:$0xf] %v1222
        %1239 = vst [vmem:[%s370 + $0x38] sm:$0xf] %v1223
        %1240 = vst [vmem:[%s370 + $0x3c] sm:$0xf] %v1224
        %p1241 = scmp.eq.s32.totalorder %s36, 0
        // Predicated region
        $region57: #{tpu_custom_call.1} parent=39 // pred_check
          %p1242 = pneg %p1241
        $region58: #{tpu_custom_call.1} parent=39 // pred_check_branch
          %1244 = sbr.rel (%p1242) target = $region60
        $region59: #{tpu_custom_call.1} parent=39 // pred_region
          %1245 = vst [vmem:[#allocation2] sm:$0xff] 0.0
          %1246 = vst [vmem:[#allocation2 + $0x8] sm:$0xff] 0.0
          %1247 = vst [vmem:[#allocation2 + $0x10] sm:$0xff] 0.0
          %1248 = vst [vmem:[#allocation2 + $0x18] sm:$0xff] 0.0
          %1249 = vst [vmem:[#allocation2 + $0x20] sm:$0xff] 0.0
          %1250 = vst [vmem:[#allocation2 + $0x28] sm:$0xff] 0.0
          %1251 = vst [vmem:[#allocation2 + $0x30] sm:$0xff] 0.0
          %1252 = vst [vmem:[#allocation2 + $0x38] sm:$0xff] 0.0
          %1253 = vst [vmem:[#allocation2 + $0x40] sm:$0xff] 0.0
          %1254 = vst [vmem:[#allocation2 + $0x48] sm:$0xff] 0.0
          %1255 = vst [vmem:[#allocation2 + $0x50] sm:$0xff] 0.0
          %1256 = vst [vmem:[#allocation2 + $0x58] sm:$0xff] 0.0
        $region60: #{tpu_custom_call.1} parent=39 // pred_fallthru
          _
        %v1257 = vld [vmem:[#allocation2] sm:$0xff]
        %v1258 = vld [vmem:[#allocation2 + $0x8] sm:$0xff]
        %v1259 = vld [vmem:[#allocation2 + $0x10] sm:$0xff]
        %v1260 = vld [vmem:[#allocation2 + $0x18] sm:$0xff]
        %v1261 = vld [vmem:[#allocation2 + $0x20] sm:$0xff]
        %v1262 = vld [vmem:[#allocation2 + $0x28] sm:$0xff]
        %v1263 = vld [vmem:[#allocation2 + $0x30] sm:$0xff]
        %v1264 = vld [vmem:[#allocation2 + $0x38] sm:$0xff]
        %v1265 = vld [vmem:[#allocation2 + $0x40] sm:$0xff]
        %v1266 = vld [vmem:[#allocation2 + $0x48] sm:$0xff]
        %v1267 = vld [vmem:[#allocation2 + $0x50] sm:$0xff]
        %v1268 = vld [vmem:[#allocation2 + $0x58] sm:$0xff]
        %v1269 = vld [vmem:[%s328] sm:$0xf]
        %v1270 = vld [vmem:[%s328 + $0x4] sm:$0xf]
        %v1273 = vunpack.c.l.b16 %v1269
        %v1274 = vunpack.c.l.b16 %v1270
        %v1275 = vpack.c.b16 %v1274, %v1273
        %1277 = vmatpush.bf16.msra.mxu0 %v521
        %1278 = vmatpush.bf16.msra.mxu0 %v515
        %1279 = vmatpush.bf16.msra.mxu0 %v509
        %1280 = vmatpush.bf16.msra.mxu0 %v503
        %1281 = vmatpush.bf16.msra.mxu0 %v497
        %1282 = vmatpush.bf16.msra.mxu0 %v491
        %1283 = vmatpush.bf16.msra.mxu0 %v485
        %1284 = vmatpush.bf16.msra.mxu0 %v479
        %1285 = vmatmul.bf16.gmra.mxu0 %v1275
        %v1286 = vpop.f32.mrf.mxu0
        %v1287 = vadd.f32 0.0, %v1286
        %v1288 = vpop.f32.mrf.mxu0
        %v1289 = vadd.f32 0.0, %v1288
        %1290 = vdwg.mxu0
        %1291 = vmatpush.bf16.msra.mxu0 %v522
        %1292 = vmatpush.bf16.msra.mxu0 %v516
        %1293 = vmatpush.bf16.msra.mxu0 %v510
        %1294 = vmatpush.bf16.msra.mxu0 %v504
        %1295 = vmatpush.bf16.msra.mxu0 %v498
        %1296 = vmatpush.bf16.msra.mxu0 %v492
        %1297 = vmatpush.bf16.msra.mxu0 %v486
        %1298 = vmatpush.bf16.msra.mxu0 %v480
        %1299 = vmatmul.bf16.gmra.mxu0 %v1275
        %v1300 = vpop.f32.mrf.mxu0
        %v1301 = vadd.f32 0.0, %v1300
        %v1302 = vpop.f32.mrf.mxu0
        %v1303 = vadd.f32 0.0, %v1302
        %1304 = vdwg.mxu0
        %1305 = vmatpush.bf16.msra.mxu0 %v523
        %1306 = vmatpush.bf16.msra.mxu0 %v517
        %1307 = vmatpush.bf16.msra.mxu0 %v511
        %1308 = vmatpush.bf16.msra.mxu0 %v505
        %1309 = vmatpush.bf16.msra.mxu0 %v499
        %1310 = vmatpush.bf16.msra.mxu0 %v493
        %1311 = vmatpush.bf16.msra.mxu0 %v487
        %1312 = vmatpush.bf16.msra.mxu0 %v481
        %1313 = vmatmul.bf16.gmra.mxu0 %v1275
        %v1314 = vpop.f32.mrf.mxu0
        %v1315 = vadd.f32 0.0, %v1314
        %v1316 = vpop.f32.mrf.mxu0
        %v1317 = vadd.f32 0.0, %v1316
        %1318 = vdwg.mxu0
        %1319 = vmatpush.bf16.msra.mxu0 %v524
        %1320 = vmatpush.bf16.msra.mxu0 %v518
        %1321 = vmatpush.bf16.msra.mxu0 %v512
        %1322 = vmatpush.bf16.msra.mxu0 %v506
        %1323 = vmatpush.bf16.msra.mxu0 %v500
        %1324 = vmatpush.bf16.msra.mxu0 %v494
        %1325 = vmatpush.bf16.msra.mxu0 %v488
        %1326 = vmatpush.bf16.msra.mxu0 %v482
        %1327 = vmatmul.bf16.gmra.mxu0 %v1275
        %v1328 = vpop.f32.mrf.mxu0
        %v1329 = vadd.f32 0.0, %v1328
        %v1330 = vpop.f32.mrf.mxu0
        %v1331 = vadd.f32 0.0, %v1330
        %1332 = vdwg.mxu0
        %1333 = vmatpush.bf16.msra.mxu0 %v525
        %1334 = vmatpush.bf16.msra.mxu0 %v519
        %1335 = vmatpush.bf16.msra.mxu0 %v513
        %1336 = vmatpush.bf16.msra.mxu0 %v507
        %1337 = vmatpush.bf16.msra.mxu0 %v501
        %1338 = vmatpush.bf16.msra.mxu0 %v495
        %1339 = vmatpush.bf16.msra.mxu0 %v489
        %1340 = vmatpush.bf16.msra.mxu0 %v483
        %1341 = vmatmul.bf16.gmra.mxu0 %v1275
        %v1342 = vpop.f32.mrf.mxu0
        %v1343 = vadd.f32 0.0, %v1342
        %v1344 = vpop.f32.mrf.mxu0
        %v1345 = vadd.f32 0.0, %v1344
        %1346 = vdwg.mxu0
        %1347 = vmatpush.bf16.msra.mxu0 %v526
        %1348 = vmatpush.bf16.msra.mxu0 %v520
        %1349 = vmatpush.bf16.msra.mxu0 %v514
        %1350 = vmatpush.bf16.msra.mxu0 %v508
        %1351 = vmatpush.bf16.msra.mxu0 %v502
        %1352 = vmatpush.bf16.msra.mxu0 %v496
        %1353 = vmatpush.bf16.msra.mxu0 %v490
        %1354 = vmatpush.bf16.msra.mxu0 %v484
        %1355 = vmatmul.bf16.gmra.mxu0 %v1275
        %v1356 = vpop.f32.mrf.mxu0
        %v1357 = vadd.f32 0.0, %v1356
        %v1358 = vpop.f32.mrf.mxu0
        %v1359 = vadd.f32 0.0, %v1358
        %1360 = vdwg.mxu0
        %v1361 = vadd.f32 %v1257, %v1287
        %v1362 = vadd.f32 %v1258, %v1301
        %v1363 = vadd.f32 %v1259, %v1315
        %v1364 = vadd.f32 %v1260, %v1329
        %v1365 = vadd.f32 %v1261, %v1343
        %v1366 = vadd.f32 %v1262, %v1357
        %v1367 = vadd.f32 %v1263, %v1289
        %v1368 = vadd.f32 %v1264, %v1303
        %v1369 = vadd.f32 %v1265, %v1317
        %v1370 = vadd.f32 %v1266, %v1331
        %v1371 = vadd.f32 %v1267, %v1345
        %v1372 = vadd.f32 %v1268, %v1359
        %1373 = vst [vmem:[#allocation2] sm:$0xff] %v1361
        %1374 = vst [vmem:[#allocation2 + $0x8] sm:$0xff] %v1362
        %1375 = vst [vmem:[#allocation2 + $0x10] sm:$0xff] %v1363
        %1376 = vst [vmem:[#allocation2 + $0x18] sm:$0xff] %v1364
        %1377 = vst [vmem:[#allocation2 + $0x20] sm:$0xff] %v1365
        %1378 = vst [vmem:[#allocation2 + $0x28] sm:$0xff] %v1366
        %1379 = vst [vmem:[#allocation2 + $0x30] sm:$0xff] %v1367
        %1380 = vst [vmem:[#allocation2 + $0x38] sm:$0xff] %v1368
        %1381 = vst [vmem:[#allocation2 + $0x40] sm:$0xff] %v1369
        %1382 = vst [vmem:[#allocation2 + $0x48] sm:$0xff] %v1370
        %1383 = vst [vmem:[#allocation2 + $0x50] sm:$0xff] %v1371
        %1384 = vst [vmem:[#allocation2 + $0x58] sm:$0xff] %v1372
        // Predicated region
        $region61: #{tpu_custom_call.1} parent=39 // pred_check
          %p1385 = pneg %p1241
        $region62: #{tpu_custom_call.1} parent=39 // pred_check_branch
          %1387 = sbr.rel (%p1385) target = $region64
        $region63: #{tpu_custom_call.1} parent=39 // pred_region
          %v1388 = vld [vmem:[#allocation2] sm:$0xff]
          %v1389 = vld [vmem:[#allocation2 + $0x8] sm:$0xff]
          %v1390 = vld [vmem:[#allocation2 + $0x10] sm:$0xff]
          %v1391 = vld [vmem:[#allocation2 + $0x18] sm:$0xff]
          %v1392 = vld [vmem:[#allocation2 + $0x20] sm:$0xff]
          %v1393 = vld [vmem:[#allocation2 + $0x28] sm:$0xff]
          %v1394 = vld [vmem:[#allocation2 + $0x30] sm:$0xff]
          %v1395 = vld [vmem:[#allocation2 + $0x38] sm:$0xff]
          %v1396 = vld [vmem:[#allocation2 + $0x40] sm:$0xff]
          %v1397 = vld [vmem:[#allocation2 + $0x48] sm:$0xff]
          %v1398 = vld [vmem:[#allocation2 + $0x50] sm:$0xff]
          %v1399 = vld [vmem:[#allocation2 + $0x58] sm:$0xff]
          %v1400 = vld [vmem:[#allocation9] sm:$0xff]
          %v1401 = vld [vmem:[#allocation9 + $0x8] sm:$0xff]
          %v1402 = vld [vmem:[#allocation9 + $0x10] sm:$0xff]
          %v1403 = vld [vmem:[#allocation9 + $0x18] sm:$0xff]
          %v1404 = vld [vmem:[#allocation9 + $0x20] sm:$0xff]
          %v1405 = vld [vmem:[#allocation9 + $0x28] sm:$0xff]
          %v1406 = vld [vmem:[#allocation9 + $0x30] sm:$0xff]
          %v1407 = vld [vmem:[#allocation9 + $0x38] sm:$0xff]
          %v1408 = vld [vmem:[#allocation9 + $0x40] sm:$0xff]
          %v1409 = vld [vmem:[#allocation9 + $0x48] sm:$0xff]
          %v1410 = vld [vmem:[#allocation9 + $0x50] sm:$0xff]
          %v1411 = vld [vmem:[#allocation9 + $0x58] sm:$0xff]
          %v1412 = vld [vmem:[#allocation9 + $0x60] sm:$0xff]
          %v1413 = vld [vmem:[#allocation9 + $0x68] sm:$0xff]
          %v1414 = vld [vmem:[#allocation9 + $0x70] sm:$0xff]
          %v1415 = vld [vmem:[#allocation9 + $0x78] sm:$0xff]
          %v1416 = vld [vmem:[#allocation9 + $0x80] sm:$0xff]
          %v1417 = vld [vmem:[#allocation9 + $0x88] sm:$0xff]
          %v1418 = vld [vmem:[#allocation9 + $0x90] sm:$0xff]
          %v1419 = vld [vmem:[#allocation9 + $0x98] sm:$0xff]
          %v1420 = vld [vmem:[#allocation9 + $0xa0] sm:$0xff]
          %v1421 = vld [vmem:[#allocation9 + $0xa8] sm:$0xff]
          %v1422 = vld [vmem:[#allocation9 + $0xb0] sm:$0xff]
          %v1423 = vld [vmem:[#allocation9 + $0xb8] sm:$0xff]
          %v1424 = vld [vmem:[#allocation9 + $0xc0] sm:$0xff]
          %v1425 = vld [vmem:[#allocation9 + $0xc8] sm:$0xff]
          %v1426 = vld [vmem:[#allocation9 + $0xd0] sm:$0xff]
          %v1427 = vld [vmem:[#allocation9 + $0xd8] sm:$0xff]
          %v1428 = vld [vmem:[#allocation9 + $0xe0] sm:$0xff]
          %v1429 = vld [vmem:[#allocation9 + $0xe8] sm:$0xff]
          %v1430 = vld [vmem:[#allocation9 + $0xf0] sm:$0xff]
          %v1431 = vld [vmem:[#allocation9 + $0xf8] sm:$0xff]
          %v1432 = vld [vmem:[#allocation9 + $0x100] sm:$0xff]
          %v1433 = vld [vmem:[#allocation9 + $0x108] sm:$0xff]
          %v1434 = vld [vmem:[#allocation9 + $0x110] sm:$0xff]
          %v1435 = vld [vmem:[#allocation9 + $0x118] sm:$0xff]
          %v1436 = vld [vmem:[#allocation9 + $0x120] sm:$0xff]
          %v1437 = vld [vmem:[#allocation9 + $0x128] sm:$0xff]
          %v1438 = vld [vmem:[#allocation9 + $0x130] sm:$0xff]
          %v1439 = vld [vmem:[#allocation9 + $0x138] sm:$0xff]
          %v1440 = vld [vmem:[#allocation9 + $0x140] sm:$0xff]
          %v1441 = vld [vmem:[#allocation9 + $0x148] sm:$0xff]
          %v1442 = vld [vmem:[#allocation9 + $0x150] sm:$0xff]
          %v1443 = vld [vmem:[#allocation9 + $0x158] sm:$0xff]
          %v1444 = vld [vmem:[#allocation9 + $0x160] sm:$0xff]
          %v1445 = vld [vmem:[#allocation9 + $0x168] sm:$0xff]
          %v1446 = vld [vmem:[#allocation9 + $0x170] sm:$0xff]
          %v1447 = vld [vmem:[#allocation9 + $0x178] sm:$0xff]
          %v1448 = vld [vmem:[#allocation9 + $0x180] sm:$0xff]
          %v1449 = vld [vmem:[#allocation9 + $0x188] sm:$0xff]
          %v1450 = vld [vmem:[#allocation9 + $0x190] sm:$0xff]
          %v1451 = vld [vmem:[#allocation9 + $0x198] sm:$0xff]
          %v1452 = vld [vmem:[#allocation9 + $0x1a0] sm:$0xff]
          %v1453 = vld [vmem:[#allocation9 + $0x1a8] sm:$0xff]
          %v1454 = vld [vmem:[#allocation9 + $0x1b0] sm:$0xff]
          %v1455 = vld [vmem:[#allocation9 + $0x1b8] sm:$0xff]
          %v1456 = vld [vmem:[#allocation9 + $0x1c0] sm:$0xff]
          %v1457 = vld [vmem:[#allocation9 + $0x1c8] sm:$0xff]
          %v1458 = vld [vmem:[#allocation9 + $0x1d0] sm:$0xff]
          %v1459 = vld [vmem:[#allocation9 + $0x1d8] sm:$0xff]
          %v1460 = vld [vmem:[#allocation9 + $0x1e0] sm:$0xff]
          %v1461 = vld [vmem:[#allocation9 + $0x1e8] sm:$0xff]
          %v1462 = vld [vmem:[#allocation9 + $0x1f0] sm:$0xff]
          %v1463 = vld [vmem:[#allocation9 + $0x1f8] sm:$0xff]
          %v1464 = vld [vmem:[#allocation9 + $0x200] sm:$0xff]
          %v1465 = vld [vmem:[#allocation9 + $0x208] sm:$0xff]
          %v1466 = vld [vmem:[#allocation9 + $0x210] sm:$0xff]
          %v1467 = vld [vmem:[#allocation9 + $0x218] sm:$0xff]
          %v1468 = vld [vmem:[#allocation9 + $0x220] sm:$0xff]
          %v1469 = vld [vmem:[#allocation9 + $0x228] sm:$0xff]
          %v1470 = vld [vmem:[#allocation9 + $0x230] sm:$0xff]
          %v1471 = vld [vmem:[#allocation9 + $0x238] sm:$0xff]
          %v1472 = vld [vmem:[#allocation9 + $0x240] sm:$0xff]
          %v1473 = vld [vmem:[#allocation9 + $0x248] sm:$0xff]
          %v1474 = vld [vmem:[#allocation9 + $0x250] sm:$0xff]
          %v1475 = vld [vmem:[#allocation9 + $0x258] sm:$0xff]
          %v1476 = vld [vmem:[#allocation9 + $0x260] sm:$0xff]
          %v1477 = vld [vmem:[#allocation9 + $0x268] sm:$0xff]
          %v1478 = vld [vmem:[#allocation9 + $0x270] sm:$0xff]
          %v1479 = vld [vmem:[#allocation9 + $0x278] sm:$0xff]
          %v1480 = vld [vmem:[#allocation9 + $0x280] sm:$0xff]
          %v1481 = vld [vmem:[#allocation9 + $0x288] sm:$0xff]
          %v1482 = vld [vmem:[#allocation9 + $0x290] sm:$0xff]
          %v1483 = vld [vmem:[#allocation9 + $0x298] sm:$0xff]
          %v1484 = vld [vmem:[#allocation9 + $0x2a0] sm:$0xff]
          %v1485 = vld [vmem:[#allocation9 + $0x2a8] sm:$0xff]
          %v1486 = vld [vmem:[#allocation9 + $0x2b0] sm:$0xff]
          %v1487 = vld [vmem:[#allocation9 + $0x2b8] sm:$0xff]
          %v1488 = vld [vmem:[#allocation9 + $0x2c0] sm:$0xff]
          %v1489 = vld [vmem:[#allocation9 + $0x2c8] sm:$0xff]
          %v1490 = vld [vmem:[#allocation9 + $0x2d0] sm:$0xff]
          %v1491 = vld [vmem:[#allocation9 + $0x2d8] sm:$0xff]
          %v1492 = vld [vmem:[#allocation9 + $0x2e0] sm:$0xff]
          %v1493 = vld [vmem:[#allocation9 + $0x2e8] sm:$0xff]
          %v1494 = vld [vmem:[#allocation9 + $0x2f0] sm:$0xff]
          %v1495 = vld [vmem:[#allocation9 + $0x2f8] sm:$0xff]
          %1496 = vmatpush.msra.mxu0 %v1415
          %1497 = vmatpush.msra.mxu0 %v1414
          %1498 = vmatpush.msra.mxu0 %v1413
          %1499 = vmatpush.msra.mxu0 %v1412
          %1500 = vmatpush.msra.mxu0 %v1411
          %1501 = vmatpush.msra.mxu0 %v1410
          %1502 = vmatpush.msra.mxu0 %v1409
          %1503 = vmatpush.msra.mxu0 %v1408
          %1504 = vmatpush.msra.mxu0 %v1407
          %1505 = vmatpush.msra.mxu0 %v1406
          %1506 = vmatpush.msra.mxu0 %v1405
          %1507 = vmatpush.msra.mxu0 %v1404
          %1508 = vmatpush.msra.mxu0 %v1403
          %1509 = vmatpush.msra.mxu0 %v1402
          %1510 = vmatpush.msra.mxu0 %v1401
          %1511 = vmatpush.msra.mxu0 %v1400
          %1512 = vmatmul.f32.gmra.mxu0 %v1388
          %v1513 = vpop.f32.mrf.mxu0
          %v1514 = vadd.f32 0.0, %v1513
          %1515 = vmatmul.f32.gmra.mxu0 %v1394
          %v1516 = vpop.f32.mrf.mxu0
          %v1517 = vadd.f32 0.0, %v1516
          %1518 = vdwg.mxu0
          %1519 = vmatpush.msra.mxu0 %v1431
          %1520 = vmatpush.msra.mxu0 %v1430
          %1521 = vmatpush.msra.mxu0 %v1429
          %1522 = vmatpush.msra.mxu0 %v1428
          %1523 = vmatpush.msra.mxu0 %v1427
          %1524 = vmatpush.msra.mxu0 %v1426
          %1525 = vmatpush.msra.mxu0 %v1425
          %1526 = vmatpush.msra.mxu0 %v1424
          %1527 = vmatpush.msra.mxu0 %v1423
          %1528 = vmatpush.msra.mxu0 %v1422
          %1529 = vmatpush.msra.mxu0 %v1421
          %1530 = vmatpush.msra.mxu0 %v1420
          %1531 = vmatpush.msra.mxu0 %v1419
          %1532 = vmatpush.msra.mxu0 %v1418
          %1533 = vmatpush.msra.mxu0 %v1417
          %1534 = vmatpush.msra.mxu0 %v1416
          %1535 = vmatmul.f32.gmra.mxu0 %v1389
          %v1536 = vpop.f32.mrf.mxu0
          %v1537 = vadd.f32 %v1514, %v1536
          %1538 = vmatmul.f32.gmra.mxu0 %v1395
          %v1539 = vpop.f32.mrf.mxu0
          %v1540 = vadd.f32 %v1517, %v1539
          %1541 = vdwg.mxu0
          %1542 = vmatpush.msra.mxu0 %v1447
          %1543 = vmatpush.msra.mxu0 %v1446
          %1544 = vmatpush.msra.mxu0 %v1445
          %1545 = vmatpush.msra.mxu0 %v1444
          %1546 = vmatpush.msra.mxu0 %v1443
          %1547 = vmatpush.msra.mxu0 %v1442
          %1548 = vmatpush.msra.mxu0 %v1441
          %1549 = vmatpush.msra.mxu0 %v1440
          %1550 = vmatpush.msra.mxu0 %v1439
          %1551 = vmatpush.msra.mxu0 %v1438
          %1552 = vmatpush.msra.mxu0 %v1437
          %1553 = vmatpush.msra.mxu0 %v1436
          %1554 = vmatpush.msra.mxu0 %v1435
          %1555 = vmatpush.msra.mxu0 %v1434
          %1556 = vmatpush.msra.mxu0 %v1433
          %1557 = vmatpush.msra.mxu0 %v1432
          %1558 = vmatmul.f32.gmra.mxu0 %v1390
          %v1559 = vpop.f32.mrf.mxu0
          %v1560 = vadd.f32 %v1537, %v1559
          %1561 = vmatmul.f32.gmra.mxu0 %v1396
          %v1562 = vpop.f32.mrf.mxu0
          %v1563 = vadd.f32 %v1540, %v1562
          %1564 = vdwg.mxu0
          %1565 = vmatpush.msra.mxu0 %v1463
          %1566 = vmatpush.msra.mxu0 %v1462
          %1567 = vmatpush.msra.mxu0 %v1461
          %1568 = vmatpush.msra.mxu0 %v1460
          %1569 = vmatpush.msra.mxu0 %v1459
          %1570 = vmatpush.msra.mxu0 %v1458
          %1571 = vmatpush.msra.mxu0 %v1457
          %1572 = vmatpush.msra.mxu0 %v1456
          %1573 = vmatpush.msra.mxu0 %v1455
          %1574 = vmatpush.msra.mxu0 %v1454
          %1575 = vmatpush.msra.mxu0 %v1453
          %1576 = vmatpush.msra.mxu0 %v1452
          %1577 = vmatpush.msra.mxu0 %v1451
          %1578 = vmatpush.msra.mxu0 %v1450
          %1579 = vmatpush.msra.mxu0 %v1449
          %1580 = vmatpush.msra.mxu0 %v1448
          %1581 = vmatmul.f32.gmra.mxu0 %v1391
          %v1582 = vpop.f32.mrf.mxu0
          %v1583 = vadd.f32 %v1560, %v1582
          %1584 = vmatmul.f32.gmra.mxu0 %v1397
          %v1585 = vpop.f32.mrf.mxu0
          %v1586 = vadd.f32 %v1563, %v1585
          %1587 = vdwg.mxu0
          %1588 = vmatpush.msra.mxu0 %v1479
          %1589 = vmatpush.msra.mxu0 %v1478
          %1590 = vmatpush.msra.mxu0 %v1477
          %1591 = vmatpush.msra.mxu0 %v1476
          %1592 = vmatpush.msra.mxu0 %v1475
          %1593 = vmatpush.msra.mxu0 %v1474
          %1594 = vmatpush.msra.mxu0 %v1473
          %1595 = vmatpush.msra.mxu0 %v1472
          %1596 = vmatpush.msra.mxu0 %v1471
          %1597 = vmatpush.msra.mxu0 %v1470
          %1598 = vmatpush.msra.mxu0 %v1469
          %1599 = vmatpush.msra.mxu0 %v1468
          %1600 = vmatpush.msra.mxu0 %v1467
          %1601 = vmatpush.msra.mxu0 %v1466
          %1602 = vmatpush.msra.mxu0 %v1465
          %1603 = vmatpush.msra.mxu0 %v1464
          %1604 = vmatmul.f32.gmra.mxu0 %v1392
          %v1605 = vpop.f32.mrf.mxu0
          %v1606 = vadd.f32 %v1583, %v1605
          %1607 = vmatmul.f32.gmra.mxu0 %v1398
          %v1608 = vpop.f32.mrf.mxu0
          %v1609 = vadd.f32 %v1586, %v1608
          %1610 = vdwg.mxu0
          %1611 = vmatpush.msra.mxu0 %v1495
          %1612 = vmatpush.msra.mxu0 %v1494
          %1613 = vmatpush.msra.mxu0 %v1493
          %1614 = vmatpush.msra.mxu0 %v1492
          %1615 = vmatpush.msra.mxu0 %v1491
          %1616 = vmatpush.msra.mxu0 %v1490
          %1617 = vmatpush.msra.mxu0 %v1489
          %1618 = vmatpush.msra.mxu0 %v1488
          %1619 = vmatpush.msra.mxu0 %v1487
          %1620 = vmatpush.msra.mxu0 %v1486
          %1621 = vmatpush.msra.mxu0 %v1485
          %1622 = vmatpush.msra.mxu0 %v1484
          %1623 = vmatpush.msra.mxu0 %v1483
          %1624 = vmatpush.msra.mxu0 %v1482
          %1625 = vmatpush.msra.mxu0 %v1481
          %1626 = vmatpush.msra.mxu0 %v1480
          %1627 = vmatmul.f32.gmra.mxu0 %v1393
          %v1628 = vpop.f32.mrf.mxu0
          %v1629 = vadd.f32 %v1606, %v1628
          %1630 = vmatmul.f32.gmra.mxu0 %v1399
          %v1631 = vpop.f32.mrf.mxu0
          %v1632 = vadd.f32 %v1609, %v1631
          %1633 = vdwg.mxu0
          %1634 = vst [vmem:[%s377] sm:$0xff] %v1629
          %1635 = vst [vmem:[%s377 + $0x8] sm:$0xff] %v1632
        $region64: #{tpu_custom_call.1} parent=39 // pred_fallthru
          _
        %s1636 = sand.u32 %s172, 1
        %s1637 = scalar_lea.sflag [#allocation5], %s1636
        %s1638 = sand.u32 %s172, 1
        %s1639 = smul.addr %s1638, 64
        %s1640 = scalar_lea.vmem [#allocation11], %s1639
        %s1641 = sand.u32 %s198, 1
        %s1642 = scalar_lea.sflag [#allocation13], %s1641
        %s1643 = sand.u32 %s198, 1
        %s1644 = smul.addr %s1643, 16
        %s1645 = scalar_lea.vmem [#allocation12], %s1644
        // Predicated region
        $region65: #{tpu_custom_call.1} parent=39 // pred_check
          %p1646 = pneg %p182
        $region66: #{tpu_custom_call.1} parent=39 // pred_check_branch
          %1648 = sbr.rel (%p1646) target = $region68
        $region67: #{tpu_custom_call.1} parent=39 // pred_region
          %s1649 = sadd.s32 %s35, %s36
          %s1650 = smul.u32 16, %s1649
          %1652 = vsyncadd %s1637, 0
          %s1653 = smul.addr %s1650, 4
          %s1654 = scalar_lea.hbm %s5, %s1653
          %s1655 = sshll.u32 %s1640, 4
          %s1656 = int_to_ptr.vmem [resolvable:$true] %s1655
          %s1657 = sshll.u32 %s1654, 4
          %s1658 = int_to_ptr.hbm [resolvable:$true] %s1657
          %1663 = dma.vmem_to_hbm [thread:$0]  %s1656, 1024, %s1658, %s1637, 64, 64, 4
        $region68: #{tpu_custom_call.1} parent=39 // pred_fallthru
          _
        // Predicated region
        $region69: #{tpu_custom_call.1} parent=39 // pred_check
          %p1664 = pneg %p208
        $region70: #{tpu_custom_call.1} parent=39 // pred_check_branch
          %1666 = sbr.rel (%p1664) target = $region72
        $region71: #{tpu_custom_call.1} parent=39 // pred_region
          %1668 = vsyncadd %s1642, 0
          %s1669 = smul.addr %s35, 2
          %s1670 = smul.addr %s1669, 8
          %s1671 = scalar_lea.hbm %s6, %s1670
          %s1672 = sshll.u32 %s1645, 4
          %s1673 = int_to_ptr.vmem [resolvable:$true] %s1672
          %s1674 = sshll.u32 %s1671, 4
          %s1675 = int_to_ptr.hbm [resolvable:$true] %s1674
          %1680 = dma.vmem_to_hbm [thread:$0]  %s1673, 256, %s1675, %s1642, 128, 128, 8
        $region72: #{tpu_custom_call.1} parent=39 // pred_fallthru
          _
      $region40: #{tpu_custom_call.1} parent=5 // pred_fallthru
        _
      %p1681 = scmp.le.s32.totalorder 2, %s26
      // Predicated region
      $region73: #{tpu_custom_call.1} parent=5 // pred_check
        %p1682 = pneg %p1681
      $region74: #{tpu_custom_call.1} parent=5 // pred_check_branch
        %1684 = sbr.rel (%p1682) target = $region76
      $region75: #{tpu_custom_call.1} parent=5 // pred_region
        %s1685 = ssub.s32 %s26, 2
        // Predicated region
        $region77: #{tpu_custom_call.1} parent=75 // pred_check
          %p1686 = pneg %p188
        $region78: #{tpu_custom_call.1} parent=75 // pred_check_branch
          %1688 = sbr.rel (%p1686) target = $region80
        $region79: #{tpu_custom_call.1} parent=75 // pred_region
          %s1689 = sand.u32 %s173, 1
          %s1690 = scalar_lea.sflag [#allocation5], %s1689
          %s1691 = sand.u32 %s173, 1
          %s1692 = smul.addr %s1691, 64
          %s1693 = scalar_lea.vmem [#allocation11], %s1692
          %1695 = dma.done %s1690, 1024
        $region80: #{tpu_custom_call.1} parent=75 // pred_fallthru
          _
        // Predicated region
        $region81: #{tpu_custom_call.1} parent=75 // pred_check
          %p1696 = pneg %p214
        $region82: #{tpu_custom_call.1} parent=75 // pred_check_branch
          %1698 = sbr.rel (%p1696) target = $region84
        $region83: #{tpu_custom_call.1} parent=75 // pred_region
          %s1699 = sand.u32 %s199, 1
          %s1700 = scalar_lea.sflag [#allocation13], %s1699
          %s1701 = sand.u32 %s199, 1
          %s1702 = smul.addr %s1701, 16
          %s1703 = scalar_lea.vmem [#allocation12], %s1702
          %1705 = dma.done %s1700, 256
        $region84: #{tpu_custom_call.1} parent=75 // pred_fallthru
          _
      $region76: #{tpu_custom_call.1} parent=5 // pred_fallthru
        _
    $region6: #{tpu_custom_call.1} parent=1 // loop_footer
      %s30 = sadd.s32 1, %s26
    $region7: #{tpu_custom_call.1} parent=1 // loop_footer_branch
      %25 = sbr.rel target = $region3
    $region8: #{tpu_custom_call.1} parent=1 // loop_exit
      _
    %1706 = vsyncpa [#allocation4], 1
    %s1707 = scalar_lea.sflag [#allocation4], 1
    %1708 = vsyncpa %s1707, 1
    %1709 = vsyncpa [#allocation7], 1
    %s1710 = scalar_lea.sflag [#allocation7], 1
    %1711 = vsyncpa %s1710, 1
    %1712 = vsyncpa [#allocation10], 1
    %1713 = vsyncpa [#allocation5], 1
    %s1714 = scalar_lea.sflag [#allocation5], 1
    %1715 = vsyncpa %s1714, 1
    %1716 = vsyncpa [#allocation13], 1
    %s1717 = scalar_lea.sflag [#allocation13], 1
    %1718 = vsyncpa %s1717, 1

</llo_original>
